<compile_context>
chip_gen: v6e
topology: v6e:2x2x1
jax: 0.10.0
libtpu: 0.0.40
codegen_flags: <defaults>
</compile_context>

<pallas_src>
import jax
import jax.numpy as jnp
from jax import lax
from jax.experimental import pallas as pl
from jax.experimental.pallas import tpu as pltpu

NUM_BLOCKS = 9          # 8 blocks in `layer` + 1 block in `layer_out`
BN_EPS = 1e-5


def _smoother_kernel(params_ref, x_ref, o_ref):
    # params_ref: SMEM f32[NUM_BLOCKS * 7], per-block scalars
    #   [w1, bn1_gamma, bn1_beta, w2, conv2_bias, bn2_gamma, bn2_beta]
    #   (conv2_bias cancels analytically inside BN2 and is not read)
    # x_ref / o_ref: VMEM f32[R, 128]  (lane-dense packing of all B*L elems)
    x = x_ref[...].astype(jnp.float32)
    inv_n = 1.0 / float(x.size)  # BN stats are over all (N, L) elements (C==1)

    out = x
    for i in range(NUM_BLOCKS):
        base = i * 7
        w1 = params_ref[base + 0]
        g1 = params_ref[base + 1]
        b1 = params_ref[base + 2]
        w2 = params_ref[base + 3]
        g2 = params_ref[base + 5]
        b2 = params_ref[base + 6]

        # ---- batch stats of `out` (single pass; sum & sumsq independent) ----
        s_sum = jnp.sum(out)
        s_sq = jnp.sum(out * out)
        mu = s_sum * inv_n
        var = jnp.maximum(s_sq * inv_n - mu * mu, 0.0)

        # Fold Conv1d(w1, bias=False) + BN1 (training mode) into one affine:
        #   BN1(out*w1) = out*s1 + t1
        r1 = lax.rsqrt(w1 * w1 * var + BN_EPS)
        s1 = w1 * g1 * r1
        t1 = b1 - s1 * mu

        # ReLU of the folded affine
        r = jnp.maximum(out * s1 + t1, 0.0)

        # ---- batch stats of the ReLU output (single pass) ----
        r_sum = jnp.sum(r)
        r_sq = jnp.sum(r * r)
        mu2 = r_sum * inv_n
        var2 = jnp.maximum(r_sq * inv_n - mu2 * mu2, 0.0)

        # Fold ConvTranspose1d(w2, bias) + BN2: the bias cancels in (h - mu_h),
        #   BN2(r*w2 + bias2) = r*s2 + t2
        r2 = lax.rsqrt(w2 * w2 * var2 + BN_EPS)
        s2 = w2 * g2 * r2
        t2 = b2 - s2 * mu2

        # residual
        out = out + r * s2 + t2

    o_ref[...] = jax.nn.sigmoid(out).astype(o_ref.dtype)


def ancestry_level_conv_smoother(x_ncl, params):
    """x_ncl: (B, 1, L) float32 (PyTorch NCL layout). Returns (B, 1, L)."""
    b, c, l = x_ncl.shape
    assert c == 1, "module is built with a single channel"
    total = b * l

    # Lane-dense repack: (B, L) -> (B*L/128, 128) when possible, so all
    # elements live in fully-occupied vregs and output stores are unmasked.
    # BN statistics are over all (B, L) elements, so this is layout-only.
    if total % 128 == 0:
        rows, cols = total // 128, 128
    else:
        rows, cols = b, l
    x2d = x_ncl.reshape(rows, cols).astype(jnp.float32)

    cost = pl.CostEstimate(
        flops=NUM_BLOCKS * 10 * total,
        transcendentals=2 * NUM_BLOCKS + total,   # per-block rsqrts + sigmoid
        bytes_accessed=2 * total * 4 + params.size * 4,
    )

    out = pl.pallas_call(
        _smoother_kernel,
        out_shape=jax.ShapeDtypeStruct((rows, cols), jnp.float32),
        grid=(1,),
        in_specs=[
            pl.BlockSpec(memory_space=pltpu.MemorySpace.SMEM),   # params (1-D)
            pl.BlockSpec((rows, cols), lambda i: (0, 0)),        # x (full)
        ],
        out_specs=pl.BlockSpec((rows, cols), lambda i: (0, 0)),
        cost_estimate=cost,
    )(params.reshape(-1).astype(jnp.float32), x2d)

    return out.reshape(b, c, l)


def _reference(x_ncl, params):
    """Pure-JAX reference of the original (unfused, two-pass BN) forward."""
    b, _, l = x_ncl.shape
    out = x_ncl.reshape(b, l).astype(jnp.float32)
    n = float(out.size)
    for i in range(NUM_BLOCKS):
        w1, g1, b1, w2, c2b, g2, b2 = [params[i, j] for j in range(7)]
        h = out * w1
        mu = jnp.sum(h) / n
        var = jnp.sum((h - mu) ** 2) / n
        h = (h - mu) / jnp.sqrt(var + BN_EPS) * g1 + b1
        h = jnp.maximum(h, 0.0)
        h = h * w2 + c2b
        mu2 = jnp.sum(h) / n
        var2 = jnp.sum((h - mu2) ** 2) / n
        h = (h - mu2) / jnp.sqrt(var2 + BN_EPS) * g2 + b2
        out = out + h
    return jax.nn.sigmoid(out).reshape(b, 1, l)


def _make_params(key):
    """Deterministic synthetic parameters.

    Per block: conv1 weight (1,1,1) -> scalar w1; bn1 gamma/beta;
               convT2 weight (1,1,1) -> scalar w2; convT2 bias; bn2 gamma/beta.
    """
    k1, k2, k3, k4, k5 = jax.random.split(key, 5)
    w1 = jax.random.uniform(k1, (NUM_BLOCKS,), minval=-1.0, maxval=1.0)
    w2 = jax.random.uniform(k2, (NUM_BLOCKS,), minval=-1.0, maxval=1.0)
    c2b = jax.random.uniform(k3, (NUM_BLOCKS,), minval=-0.5, maxval=0.5)
    g1 = 1.0 + 0.1 * jax.random.normal(k4, (NUM_BLOCKS,))
    g2 = 1.0 + 0.1 * jax.random.normal(k5, (NUM_BLOCKS,))
    b1 = jnp.zeros((NUM_BLOCKS,), jnp.float32)
    b2 = jnp.zeros((NUM_BLOCKS,), jnp.float32)
    # column order: [w1, g1, b1, w2, c2b, g2, b2]
    return jnp.stack([w1, g1, b1, w2, c2b, g2, b2], axis=1).astype(jnp.float32)


if __name__ == "__main__":
    key = jax.random.PRNGKey(0)
    kp, kx = jax.random.split(key)

    params = _make_params(kp)
    B, C, L = 2, 1, 256
    x = jax.random.normal(kx, (B, C, L), dtype=jnp.float32)

    out = ancestry_level_conv_smoother(x, params)
    out = jax.block_until_ready(out)

    ref = _reference(x, params)
    assert out.shape == (B, C, L)
    # Kernel uses the algebraically-folded affines and single-pass variance;
    # sigmoid output is in [0, 1], so 1e-4 absolute is a tight check.
    assert jnp.allclose(out, ref, atol=1e-4, rtol=1e-4), "mismatch vs reference"

    print("KERNEL_OK")
</pallas_src>

<mosaic_0001>
module attributes {stable_mosaic.version = 11 : i64} {
  func.func @_smoother_kernel(%arg0: i32, %arg1: memref<63xf32, #tpu.memory_space<smem>>, %arg2: memref<4x128xf32, #tpu.memory_space<vmem>>, %arg3: memref<4x128xf32, #tpu.memory_space<vmem>>) attributes {dimension_semantics = [#tpu.dimension_semantics<arbitrary>], iteration_bounds = array<i64: 1>, scalar_prefetch = 0 : i64, scratch_operands = 0 : i64, tpu.core_type = #tpu.core_type<tc>, window_params = [{transform_indices = @transform_0, window_bounds = array<i64: 63>}, {pipeline_mode = #tpu.pipeline_mode<synchronous>, transform_indices = @transform_1, window_bounds = array<i64: 4, 128>}, {pipeline_mode = #tpu.pipeline_mode<synchronous>, transform_indices = @transform_2, window_bounds = array<i64: 4, 128>}]} {
    %c0 = arith.constant 0 : index
    %c0_0 = arith.constant 0 : index
    %0 = vector.load %arg2[%c0, %c0_0] : memref<4x128xf32, #tpu.memory_space<vmem>>, vector<4x128xf32>
    %c0_1 = arith.constant 0 : index
    %1 = memref.load %arg1[%c0_1] : memref<63xf32, #tpu.memory_space<smem>>
    %c1 = arith.constant 1 : index
    %2 = memref.load %arg1[%c1] : memref<63xf32, #tpu.memory_space<smem>>
    %c2 = arith.constant 2 : index
    %3 = memref.load %arg1[%c2] : memref<63xf32, #tpu.memory_space<smem>>
    %c3 = arith.constant 3 : index
    %4 = memref.load %arg1[%c3] : memref<63xf32, #tpu.memory_space<smem>>
    %c5 = arith.constant 5 : index
    %5 = memref.load %arg1[%c5] : memref<63xf32, #tpu.memory_space<smem>>
    %c6 = arith.constant 6 : index
    %6 = memref.load %arg1[%c6] : memref<63xf32, #tpu.memory_space<smem>>
    %7 = vector.shape_cast %0 : vector<4x128xf32> to vector<1x4x128xf32>
    %cst = arith.constant dense<0.000000e+00> : vector<1xf32>
    %8 = vector.multi_reduction <add>, %7, %cst [1, 2] : vector<1x4x128xf32> to vector<1xf32>
    %9 = vector.shape_cast %8 : vector<1xf32> to vector<1x1x1xf32>
    %10 = vector.extract %9[0, 0, 0] : f32 from vector<1x1x1xf32>
    %11 = arith.mulf %0, %0 : vector<4x128xf32>
    %12 = vector.shape_cast %11 : vector<4x128xf32> to vector<1x4x128xf32>
    %cst_2 = arith.constant dense<0.000000e+00> : vector<1xf32>
    %13 = vector.multi_reduction <add>, %12, %cst_2 [1, 2] : vector<1x4x128xf32> to vector<1xf32>
    %14 = vector.shape_cast %13 : vector<1xf32> to vector<1x1x1xf32>
    %15 = vector.extract %14[0, 0, 0] : f32 from vector<1x1x1xf32>
    %cst_3 = arith.constant 0.001953125 : f32
    %16 = arith.mulf %10, %cst_3 : f32
    %cst_4 = arith.constant 0.001953125 : f32
    %17 = arith.mulf %15, %cst_4 : f32
    %18 = arith.mulf %16, %16 : f32
    %19 = arith.subf %17, %18 : f32
    %cst_5 = arith.constant 0.000000e+00 : f32
    %20 = arith.maximumf %19, %cst_5 : f32
    %21 = arith.mulf %1, %1 : f32
    %22 = arith.mulf %21, %20 : f32
    %cst_6 = arith.constant 9.99999974E-6 : f32
    %23 = arith.addf %22, %cst_6 : f32
    %24 = math.rsqrt %23 : f32
    %25 = arith.mulf %1, %2 : f32
    %26 = arith.mulf %25, %24 : f32
    %27 = arith.mulf %26, %16 : f32
    %28 = arith.subf %3, %27 : f32
    %29 = vector.broadcast %26 : f32 to vector<4x128xf32>
    %30 = arith.mulf %0, %29 : vector<4x128xf32>
    %31 = vector.broadcast %28 : f32 to vector<4x128xf32>
    %32 = arith.addf %30, %31 : vector<4x128xf32>
    %cst_7 = arith.constant 0.000000e+00 : f32
    %33 = vector.broadcast %cst_7 : f32 to vector<4x128xf32>
    %34 = arith.maximumf %32, %33 : vector<4x128xf32>
    %35 = vector.shape_cast %34 : vector<4x128xf32> to vector<1x4x128xf32>
    %cst_8 = arith.constant dense<0.000000e+00> : vector<1xf32>
    %36 = vector.multi_reduction <add>, %35, %cst_8 [1, 2] : vector<1x4x128xf32> to vector<1xf32>
    %37 = vector.shape_cast %36 : vector<1xf32> to vector<1x1x1xf32>
    %38 = vector.extract %37[0, 0, 0] : f32 from vector<1x1x1xf32>
    %39 = arith.mulf %34, %34 : vector<4x128xf32>
    %40 = vector.shape_cast %39 : vector<4x128xf32> to vector<1x4x128xf32>
    %cst_9 = arith.constant dense<0.000000e+00> : vector<1xf32>
    %41 = vector.multi_reduction <add>, %40, %cst_9 [1, 2] : vector<1x4x128xf32> to vector<1xf32>
    %42 = vector.shape_cast %41 : vector<1xf32> to vector<1x1x1xf32>
    %43 = vector.extract %42[0, 0, 0] : f32 from vector<1x1x1xf32>
    %cst_10 = arith.constant 0.001953125 : f32
    %44 = arith.mulf %38, %cst_10 : f32
    %cst_11 = arith.constant 0.001953125 : f32
    %45 = arith.mulf %43, %cst_11 : f32
    %46 = arith.mulf %44, %44 : f32
    %47 = arith.subf %45, %46 : f32
    %cst_12 = arith.constant 0.000000e+00 : f32
    %48 = arith.maximumf %47, %cst_12 : f32
    %49 = arith.mulf %4, %4 : f32
    %50 = arith.mulf %49, %48 : f32
    %cst_13 = arith.constant 9.99999974E-6 : f32
    %51 = arith.addf %50, %cst_13 : f32
    %52 = math.rsqrt %51 : f32
    %53 = arith.mulf %4, %5 : f32
    %54 = arith.mulf %53, %52 : f32
    %55 = arith.mulf %54, %44 : f32
    %56 = arith.subf %6, %55 : f32
    %57 = vector.broadcast %54 : f32 to vector<4x128xf32>
    %58 = arith.mulf %34, %57 : vector<4x128xf32>
    %59 = arith.addf %0, %58 : vector<4x128xf32>
    %60 = vector.broadcast %56 : f32 to vector<4x128xf32>
    %61 = arith.addf %59, %60 : vector<4x128xf32>
    %c7 = arith.constant 7 : index
    %62 = memref.load %arg1[%c7] : memref<63xf32, #tpu.memory_space<smem>>
    %c8 = arith.constant 8 : index
    %63 = memref.load %arg1[%c8] : memref<63xf32, #tpu.memory_space<smem>>
    %c9 = arith.constant 9 : index
    %64 = memref.load %arg1[%c9] : memref<63xf32, #tpu.memory_space<smem>>
    %c10 = arith.constant 10 : index
    %65 = memref.load %arg1[%c10] : memref<63xf32, #tpu.memory_space<smem>>
    %c12 = arith.constant 12 : index
    %66 = memref.load %arg1[%c12] : memref<63xf32, #tpu.memory_space<smem>>
    %c13 = arith.constant 13 : index
    %67 = memref.load %arg1[%c13] : memref<63xf32, #tpu.memory_space<smem>>
    %68 = vector.shape_cast %61 : vector<4x128xf32> to vector<1x4x128xf32>
    %cst_14 = arith.constant dense<0.000000e+00> : vector<1xf32>
    %69 = vector.multi_reduction <add>, %68, %cst_14 [1, 2] : vector<1x4x128xf32> to vector<1xf32>
    %70 = vector.shape_cast %69 : vector<1xf32> to vector<1x1x1xf32>
    %71 = vector.extract %70[0, 0, 0] : f32 from vector<1x1x1xf32>
    %72 = arith.mulf %61, %61 : vector<4x128xf32>
    %73 = vector.shape_cast %72 : vector<4x128xf32> to vector<1x4x128xf32>
    %cst_15 = arith.constant dense<0.000000e+00> : vector<1xf32>
    %74 = vector.multi_reduction <add>, %73, %cst_15 [1, 2] : vector<1x4x128xf32> to vector<1xf32>
    %75 = vector.shape_cast %74 : vector<1xf32> to vector<1x1x1xf32>
    %76 = vector.extract %75[0, 0, 0] : f32 from vector<1x1x1xf32>
    %cst_16 = arith.constant 0.001953125 : f32
    %77 = arith.mulf %71, %cst_16 : f32
    %cst_17 = arith.constant 0.001953125 : f32
    %78 = arith.mulf %76, %cst_17 : f32
    %79 = arith.mulf %77, %77 : f32
    %80 = arith.subf %78, %79 : f32
    %cst_18 = arith.constant 0.000000e+00 : f32
    %81 = arith.maximumf %80, %cst_18 : f32
    %82 = arith.mulf %62, %62 : f32
    %83 = arith.mulf %82, %81 : f32
    %cst_19 = arith.constant 9.99999974E-6 : f32
    %84 = arith.addf %83, %cst_19 : f32
    %85 = math.rsqrt %84 : f32
    %86 = arith.mulf %62, %63 : f32
    %87 = arith.mulf %86, %85 : f32
    %88 = arith.mulf %87, %77 : f32
    %89 = arith.subf %64, %88 : f32
    %90 = vector.broadcast %87 : f32 to vector<4x128xf32>
    %91 = arith.mulf %61, %90 : vector<4x128xf32>
    %92 = vector.broadcast %89 : f32 to vector<4x128xf32>
    %93 = arith.addf %91, %92 : vector<4x128xf32>
    %cst_20 = arith.constant 0.000000e+00 : f32
    %94 = vector.broadcast %cst_20 : f32 to vector<4x128xf32>
    %95 = arith.maximumf %93, %94 : vector<4x128xf32>
    %96 = vector.shape_cast %95 : vector<4x128xf32> to vector<1x4x128xf32>
    %cst_21 = arith.constant dense<0.000000e+00> : vector<1xf32>
    %97 = vector.multi_reduction <add>, %96, %cst_21 [1, 2] : vector<1x4x128xf32> to vector<1xf32>
    %98 = vector.shape_cast %97 : vector<1xf32> to vector<1x1x1xf32>
    %99 = vector.extract %98[0, 0, 0] : f32 from vector<1x1x1xf32>
    %100 = arith.mulf %95, %95 : vector<4x128xf32>
    %101 = vector.shape_cast %100 : vector<4x128xf32> to vector<1x4x128xf32>
    %cst_22 = arith.constant dense<0.000000e+00> : vector<1xf32>
    %102 = vector.multi_reduction <add>, %101, %cst_22 [1, 2] : vector<1x4x128xf32> to vector<1xf32>
    %103 = vector.shape_cast %102 : vector<1xf32> to vector<1x1x1xf32>
    %104 = vector.extract %103[0, 0, 0] : f32 from vector<1x1x1xf32>
    %cst_23 = arith.constant 0.001953125 : f32
    %105 = arith.mulf %99, %cst_23 : f32
    %cst_24 = arith.constant 0.001953125 : f32
    %106 = arith.mulf %104, %cst_24 : f32
    %107 = arith.mulf %105, %105 : f32
    %108 = arith.subf %106, %107 : f32
    %cst_25 = arith.constant 0.000000e+00 : f32
    %109 = arith.maximumf %108, %cst_25 : f32
    %110 = arith.mulf %65, %65 : f32
    %111 = arith.mulf %110, %109 : f32
    %cst_26 = arith.constant 9.99999974E-6 : f32
    %112 = arith.addf %111, %cst_26 : f32
    %113 = math.rsqrt %112 : f32
    %114 = arith.mulf %65, %66 : f32
    %115 = arith.mulf %114, %113 : f32
    %116 = arith.mulf %115, %105 : f32
    %117 = arith.subf %67, %116 : f32
    %118 = vector.broadcast %115 : f32 to vector<4x128xf32>
    %119 = arith.mulf %95, %118 : vector<4x128xf32>
    %120 = arith.addf %61, %119 : vector<4x128xf32>
    %121 = vector.broadcast %117 : f32 to vector<4x128xf32>
    %122 = arith.addf %120, %121 : vector<4x128xf32>
    %c14 = arith.constant 14 : index
    %123 = memref.load %arg1[%c14] : memref<63xf32, #tpu.memory_space<smem>>
    %c15 = arith.constant 15 : index
    %124 = memref.load %arg1[%c15] : memref<63xf32, #tpu.memory_space<smem>>
    %c16 = arith.constant 16 : index
    %125 = memref.load %arg1[%c16] : memref<63xf32, #tpu.memory_space<smem>>
    %c17 = arith.constant 17 : index
    %126 = memref.load %arg1[%c17] : memref<63xf32, #tpu.memory_space<smem>>
    %c19 = arith.constant 19 : index
    %127 = memref.load %arg1[%c19] : memref<63xf32, #tpu.memory_space<smem>>
    %c20 = arith.constant 20 : index
    %128 = memref.load %arg1[%c20] : memref<63xf32, #tpu.memory_space<smem>>
    %129 = vector.shape_cast %122 : vector<4x128xf32> to vector<1x4x128xf32>
    %cst_27 = arith.constant dense<0.000000e+00> : vector<1xf32>
    %130 = vector.multi_reduction <add>, %129, %cst_27 [1, 2] : vector<1x4x128xf32> to vector<1xf32>
    %131 = vector.shape_cast %130 : vector<1xf32> to vector<1x1x1xf32>
    %132 = vector.extract %131[0, 0, 0] : f32 from vector<1x1x1xf32>
    %133 = arith.mulf %122, %122 : vector<4x128xf32>
    %134 = vector.shape_cast %133 : vector<4x128xf32> to vector<1x4x128xf32>
    %cst_28 = arith.constant dense<0.000000e+00> : vector<1xf32>
    %135 = vector.multi_reduction <add>, %134, %cst_28 [1, 2] : vector<1x4x128xf32> to vector<1xf32>
    %136 = vector.shape_cast %135 : vector<1xf32> to vector<1x1x1xf32>
    %137 = vector.extract %136[0, 0, 0] : f32 from vector<1x1x1xf32>
    %cst_29 = arith.constant 0.001953125 : f32
    %138 = arith.mulf %132, %cst_29 : f32
    %cst_30 = arith.constant 0.001953125 : f32
    %139 = arith.mulf %137, %cst_30 : f32
    %140 = arith.mulf %138, %138 : f32
    %141 = arith.subf %139, %140 : f32
    %cst_31 = arith.constant 0.000000e+00 : f32
    %142 = arith.maximumf %141, %cst_31 : f32
    %143 = arith.mulf %123, %123 : f32
    %144 = arith.mulf %143, %142 : f32
    %cst_32 = arith.constant 9.99999974E-6 : f32
    %145 = arith.addf %144, %cst_32 : f32
    %146 = math.rsqrt %145 : f32
    %147 = arith.mulf %123, %124 : f32
    %148 = arith.mulf %147, %146 : f32
    %149 = arith.mulf %148, %138 : f32
    %150 = arith.subf %125, %149 : f32
    %151 = vector.broadcast %148 : f32 to vector<4x128xf32>
    %152 = arith.mulf %122, %151 : vector<4x128xf32>
    %153 = vector.broadcast %150 : f32 to vector<4x128xf32>
    %154 = arith.addf %152, %153 : vector<4x128xf32>
    %cst_33 = arith.constant 0.000000e+00 : f32
    %155 = vector.broadcast %cst_33 : f32 to vector<4x128xf32>
    %156 = arith.maximumf %154, %155 : vector<4x128xf32>
    %157 = vector.shape_cast %156 : vector<4x128xf32> to vector<1x4x128xf32>
    %cst_34 = arith.constant dense<0.000000e+00> : vector<1xf32>
    %158 = vector.multi_reduction <add>, %157, %cst_34 [1, 2] : vector<1x4x128xf32> to vector<1xf32>
    %159 = vector.shape_cast %158 : vector<1xf32> to vector<1x1x1xf32>
    %160 = vector.extract %159[0, 0, 0] : f32 from vector<1x1x1xf32>
    %161 = arith.mulf %156, %156 : vector<4x128xf32>
    %162 = vector.shape_cast %161 : vector<4x128xf32> to vector<1x4x128xf32>
    %cst_35 = arith.constant dense<0.000000e+00> : vector<1xf32>
    %163 = vector.multi_reduction <add>, %162, %cst_35 [1, 2] : vector<1x4x128xf32> to vector<1xf32>
    %164 = vector.shape_cast %163 : vector<1xf32> to vector<1x1x1xf32>
    %165 = vector.extract %164[0, 0, 0] : f32 from vector<1x1x1xf32>
    %cst_36 = arith.constant 0.001953125 : f32
    %166 = arith.mulf %160, %cst_36 : f32
    %cst_37 = arith.constant 0.001953125 : f32
    %167 = arith.mulf %165, %cst_37 : f32
    %168 = arith.mulf %166, %166 : f32
    %169 = arith.subf %167, %168 : f32
    %cst_38 = arith.constant 0.000000e+00 : f32
    %170 = arith.maximumf %169, %cst_38 : f32
    %171 = arith.mulf %126, %126 : f32
    %172 = arith.mulf %171, %170 : f32
    %cst_39 = arith.constant 9.99999974E-6 : f32
    %173 = arith.addf %172, %cst_39 : f32
    %174 = math.rsqrt %173 : f32
    %175 = arith.mulf %126, %127 : f32
    %176 = arith.mulf %175, %174 : f32
    %177 = arith.mulf %176, %166 : f32
    %178 = arith.subf %128, %177 : f32
    %179 = vector.broadcast %176 : f32 to vector<4x128xf32>
    %180 = arith.mulf %156, %179 : vector<4x128xf32>
    %181 = arith.addf %122, %180 : vector<4x128xf32>
    %182 = vector.broadcast %178 : f32 to vector<4x128xf32>
    %183 = arith.addf %181, %182 : vector<4x128xf32>
    %c21 = arith.constant 21 : index
    %184 = memref.load %arg1[%c21] : memref<63xf32, #tpu.memory_space<smem>>
    %c22 = arith.constant 22 : index
    %185 = memref.load %arg1[%c22] : memref<63xf32, #tpu.memory_space<smem>>
    %c23 = arith.constant 23 : index
    %186 = memref.load %arg1[%c23] : memref<63xf32, #tpu.memory_space<smem>>
    %c24 = arith.constant 24 : index
    %187 = memref.load %arg1[%c24] : memref<63xf32, #tpu.memory_space<smem>>
    %c26 = arith.constant 26 : index
    %188 = memref.load %arg1[%c26] : memref<63xf32, #tpu.memory_space<smem>>
    %c27 = arith.constant 27 : index
    %189 = memref.load %arg1[%c27] : memref<63xf32, #tpu.memory_space<smem>>
    %190 = vector.shape_cast %183 : vector<4x128xf32> to vector<1x4x128xf32>
    %cst_40 = arith.constant dense<0.000000e+00> : vector<1xf32>
    %191 = vector.multi_reduction <add>, %190, %cst_40 [1, 2] : vector<1x4x128xf32> to vector<1xf32>
    %192 = vector.shape_cast %191 : vector<1xf32> to vector<1x1x1xf32>
    %193 = vector.extract %192[0, 0, 0] : f32 from vector<1x1x1xf32>
    %194 = arith.mulf %183, %183 : vector<4x128xf32>
    %195 = vector.shape_cast %194 : vector<4x128xf32> to vector<1x4x128xf32>
    %cst_41 = arith.constant dense<0.000000e+00> : vector<1xf32>
    %196 = vector.multi_reduction <add>, %195, %cst_41 [1, 2] : vector<1x4x128xf32> to vector<1xf32>
    %197 = vector.shape_cast %196 : vector<1xf32> to vector<1x1x1xf32>
    %198 = vector.extract %197[0, 0, 0] : f32 from vector<1x1x1xf32>
    %cst_42 = arith.constant 0.001953125 : f32
    %199 = arith.mulf %193, %cst_42 : f32
    %cst_43 = arith.constant 0.001953125 : f32
    %200 = arith.mulf %198, %cst_43 : f32
    %201 = arith.mulf %199, %199 : f32
    %202 = arith.subf %200, %201 : f32
    %cst_44 = arith.constant 0.000000e+00 : f32
    %203 = arith.maximumf %202, %cst_44 : f32
    %204 = arith.mulf %184, %184 : f32
    %205 = arith.mulf %204, %203 : f32
    %cst_45 = arith.constant 9.99999974E-6 : f32
    %206 = arith.addf %205, %cst_45 : f32
    %207 = math.rsqrt %206 : f32
    %208 = arith.mulf %184, %185 : f32
    %209 = arith.mulf %208, %207 : f32
    %210 = arith.mulf %209, %199 : f32
    %211 = arith.subf %186, %210 : f32
    %212 = vector.broadcast %209 : f32 to vector<4x128xf32>
    %213 = arith.mulf %183, %212 : vector<4x128xf32>
    %214 = vector.broadcast %211 : f32 to vector<4x128xf32>
    %215 = arith.addf %213, %214 : vector<4x128xf32>
    %cst_46 = arith.constant 0.000000e+00 : f32
    %216 = vector.broadcast %cst_46 : f32 to vector<4x128xf32>
    %217 = arith.maximumf %215, %216 : vector<4x128xf32>
    %218 = vector.shape_cast %217 : vector<4x128xf32> to vector<1x4x128xf32>
    %cst_47 = arith.constant dense<0.000000e+00> : vector<1xf32>
    %219 = vector.multi_reduction <add>, %218, %cst_47 [1, 2] : vector<1x4x128xf32> to vector<1xf32>
    %220 = vector.shape_cast %219 : vector<1xf32> to vector<1x1x1xf32>
    %221 = vector.extract %220[0, 0, 0] : f32 from vector<1x1x1xf32>
    %222 = arith.mulf %217, %217 : vector<4x128xf32>
    %223 = vector.shape_cast %222 : vector<4x128xf32> to vector<1x4x128xf32>
    %cst_48 = arith.constant dense<0.000000e+00> : vector<1xf32>
    %224 = vector.multi_reduction <add>, %223, %cst_48 [1, 2] : vector<1x4x128xf32> to vector<1xf32>
    %225 = vector.shape_cast %224 : vector<1xf32> to vector<1x1x1xf32>
    %226 = vector.extract %225[0, 0, 0] : f32 from vector<1x1x1xf32>
    %cst_49 = arith.constant 0.001953125 : f32
    %227 = arith.mulf %221, %cst_49 : f32
    %cst_50 = arith.constant 0.001953125 : f32
    %228 = arith.mulf %226, %cst_50 : f32
    %229 = arith.mulf %227, %227 : f32
    %230 = arith.subf %228, %229 : f32
    %cst_51 = arith.constant 0.000000e+00 : f32
    %231 = arith.maximumf %230, %cst_51 : f32
    %232 = arith.mulf %187, %187 : f32
    %233 = arith.mulf %232, %231 : f32
    %cst_52 = arith.constant 9.99999974E-6 : f32
    %234 = arith.addf %233, %cst_52 : f32
    %235 = math.rsqrt %234 : f32
    %236 = arith.mulf %187, %188 : f32
    %237 = arith.mulf %236, %235 : f32
    %238 = arith.mulf %237, %227 : f32
    %239 = arith.subf %189, %238 : f32
    %240 = vector.broadcast %237 : f32 to vector<4x128xf32>
    %241 = arith.mulf %217, %240 : vector<4x128xf32>
    %242 = arith.addf %183, %241 : vector<4x128xf32>
    %243 = vector.broadcast %239 : f32 to vector<4x128xf32>
    %244 = arith.addf %242, %243 : vector<4x128xf32>
    %c28 = arith.constant 28 : index
    %245 = memref.load %arg1[%c28] : memref<63xf32, #tpu.memory_space<smem>>
    %c29 = arith.constant 29 : index
    %246 = memref.load %arg1[%c29] : memref<63xf32, #tpu.memory_space<smem>>
    %c30 = arith.constant 30 : index
    %247 = memref.load %arg1[%c30] : memref<63xf32, #tpu.memory_space<smem>>
    %c31 = arith.constant 31 : index
    %248 = memref.load %arg1[%c31] : memref<63xf32, #tpu.memory_space<smem>>
    %c33 = arith.constant 33 : index
    %249 = memref.load %arg1[%c33] : memref<63xf32, #tpu.memory_space<smem>>
    %c34 = arith.constant 34 : index
    %250 = memref.load %arg1[%c34] : memref<63xf32, #tpu.memory_space<smem>>
    %251 = vector.shape_cast %244 : vector<4x128xf32> to vector<1x4x128xf32>
    %cst_53 = arith.constant dense<0.000000e+00> : vector<1xf32>
    %252 = vector.multi_reduction <add>, %251, %cst_53 [1, 2] : vector<1x4x128xf32> to vector<1xf32>
    %253 = vector.shape_cast %252 : vector<1xf32> to vector<1x1x1xf32>
    %254 = vector.extract %253[0, 0, 0] : f32 from vector<1x1x1xf32>
    %255 = arith.mulf %244, %244 : vector<4x128xf32>
    %256 = vector.shape_cast %255 : vector<4x128xf32> to vector<1x4x128xf32>
    %cst_54 = arith.constant dense<0.000000e+00> : vector<1xf32>
    %257 = vector.multi_reduction <add>, %256, %cst_54 [1, 2] : vector<1x4x128xf32> to vector<1xf32>
    %258 = vector.shape_cast %257 : vector<1xf32> to vector<1x1x1xf32>
    %259 = vector.extract %258[0, 0, 0] : f32 from vector<1x1x1xf32>
    %cst_55 = arith.constant 0.001953125 : f32
    %260 = arith.mulf %254, %cst_55 : f32
    %cst_56 = arith.constant 0.001953125 : f32
    %261 = arith.mulf %259, %cst_56 : f32
    %262 = arith.mulf %260, %260 : f32
    %263 = arith.subf %261, %262 : f32
    %cst_57 = arith.constant 0.000000e+00 : f32
    %264 = arith.maximumf %263, %cst_57 : f32
    %265 = arith.mulf %245, %245 : f32
    %266 = arith.mulf %265, %264 : f32
    %cst_58 = arith.constant 9.99999974E-6 : f32
    %267 = arith.addf %266, %cst_58 : f32
    %268 = math.rsqrt %267 : f32
    %269 = arith.mulf %245, %246 : f32
    %270 = arith.mulf %269, %268 : f32
    %271 = arith.mulf %270, %260 : f32
    %272 = arith.subf %247, %271 : f32
    %273 = vector.broadcast %270 : f32 to vector<4x128xf32>
    %274 = arith.mulf %244, %273 : vector<4x128xf32>
    %275 = vector.broadcast %272 : f32 to vector<4x128xf32>
    %276 = arith.addf %274, %275 : vector<4x128xf32>
    %cst_59 = arith.constant 0.000000e+00 : f32
    %277 = vector.broadcast %cst_59 : f32 to vector<4x128xf32>
    %278 = arith.maximumf %276, %277 : vector<4x128xf32>
    %279 = vector.shape_cast %278 : vector<4x128xf32> to vector<1x4x128xf32>
    %cst_60 = arith.constant dense<0.000000e+00> : vector<1xf32>
    %280 = vector.multi_reduction <add>, %279, %cst_60 [1, 2] : vector<1x4x128xf32> to vector<1xf32>
    %281 = vector.shape_cast %280 : vector<1xf32> to vector<1x1x1xf32>
    %282 = vector.extract %281[0, 0, 0] : f32 from vector<1x1x1xf32>
    %283 = arith.mulf %278, %278 : vector<4x128xf32>
    %284 = vector.shape_cast %283 : vector<4x128xf32> to vector<1x4x128xf32>
    %cst_61 = arith.constant dense<0.000000e+00> : vector<1xf32>
    %285 = vector.multi_reduction <add>, %284, %cst_61 [1, 2] : vector<1x4x128xf32> to vector<1xf32>
    %286 = vector.shape_cast %285 : vector<1xf32> to vector<1x1x1xf32>
    %287 = vector.extract %286[0, 0, 0] : f32 from vector<1x1x1xf32>
    %cst_62 = arith.constant 0.001953125 : f32
    %288 = arith.mulf %282, %cst_62 : f32
    %cst_63 = arith.constant 0.001953125 : f32
    %289 = arith.mulf %287, %cst_63 : f32
    %290 = arith.mulf %288, %288 : f32
    %291 = arith.subf %289, %290 : f32
    %cst_64 = arith.constant 0.000000e+00 : f32
    %292 = arith.maximumf %291, %cst_64 : f32
    %293 = arith.mulf %248, %248 : f32
    %294 = arith.mulf %293, %292 : f32
    %cst_65 = arith.constant 9.99999974E-6 : f32
    %295 = arith.addf %294, %cst_65 : f32
    %296 = math.rsqrt %295 : f32
    %297 = arith.mulf %248, %249 : f32
    %298 = arith.mulf %297, %296 : f32
    %299 = arith.mulf %298, %288 : f32
    %300 = arith.subf %250, %299 : f32
    %301 = vector.broadcast %298 : f32 to vector<4x128xf32>
    %302 = arith.mulf %278, %301 : vector<4x128xf32>
    %303 = arith.addf %244, %302 : vector<4x128xf32>
    %304 = vector.broadcast %300 : f32 to vector<4x128xf32>
    %305 = arith.addf %303, %304 : vector<4x128xf32>
    %c35 = arith.constant 35 : index
    %306 = memref.load %arg1[%c35] : memref<63xf32, #tpu.memory_space<smem>>
    %c36 = arith.constant 36 : index
    %307 = memref.load %arg1[%c36] : memref<63xf32, #tpu.memory_space<smem>>
    %c37 = arith.constant 37 : index
    %308 = memref.load %arg1[%c37] : memref<63xf32, #tpu.memory_space<smem>>
    %c38 = arith.constant 38 : index
    %309 = memref.load %arg1[%c38] : memref<63xf32, #tpu.memory_space<smem>>
    %c40 = arith.constant 40 : index
    %310 = memref.load %arg1[%c40] : memref<63xf32, #tpu.memory_space<smem>>
    %c41 = arith.constant 41 : index
    %311 = memref.load %arg1[%c41] : memref<63xf32, #tpu.memory_space<smem>>
    %312 = vector.shape_cast %305 : vector<4x128xf32> to vector<1x4x128xf32>
    %cst_66 = arith.constant dense<0.000000e+00> : vector<1xf32>
    %313 = vector.multi_reduction <add>, %312, %cst_66 [1, 2] : vector<1x4x128xf32> to vector<1xf32>
    %314 = vector.shape_cast %313 : vector<1xf32> to vector<1x1x1xf32>
    %315 = vector.extract %314[0, 0, 0] : f32 from vector<1x1x1xf32>
    %316 = arith.mulf %305, %305 : vector<4x128xf32>
    %317 = vector.shape_cast %316 : vector<4x128xf32> to vector<1x4x128xf32>
    %cst_67 = arith.constant dense<0.000000e+00> : vector<1xf32>
    %318 = vector.multi_reduction <add>, %317, %cst_67 [1, 2] : vector<1x4x128xf32> to vector<1xf32>
    %319 = vector.shape_cast %318 : vector<1xf32> to vector<1x1x1xf32>
    %320 = vector.extract %319[0, 0, 0] : f32 from vector<1x1x1xf32>
    %cst_68 = arith.constant 0.001953125 : f32
    %321 = arith.mulf %315, %cst_68 : f32
    %cst_69 = arith.constant 0.001953125 : f32
    %322 = arith.mulf %320, %cst_69 : f32
    %323 = arith.mulf %321, %321 : f32
    %324 = arith.subf %322, %323 : f32
    %cst_70 = arith.constant 0.000000e+00 : f32
    %325 = arith.maximumf %324, %cst_70 : f32
    %326 = arith.mulf %306, %306 : f32
    %327 = arith.mulf %326, %325 : f32
    %cst_71 = arith.constant 9.99999974E-6 : f32
    %328 = arith.addf %327, %cst_71 : f32
    %329 = math.rsqrt %328 : f32
    %330 = arith.mulf %306, %307 : f32
    %331 = arith.mulf %330, %329 : f32
    %332 = arith.mulf %331, %321 : f32
    %333 = arith.subf %308, %332 : f32
    %334 = vector.broadcast %331 : f32 to vector<4x128xf32>
    %335 = arith.mulf %305, %334 : vector<4x128xf32>
    %336 = vector.broadcast %333 : f32 to vector<4x128xf32>
    %337 = arith.addf %335, %336 : vector<4x128xf32>
    %cst_72 = arith.constant 0.000000e+00 : f32
    %338 = vector.broadcast %cst_72 : f32 to vector<4x128xf32>
    %339 = arith.maximumf %337, %338 : vector<4x128xf32>
    %340 = vector.shape_cast %339 : vector<4x128xf32> to vector<1x4x128xf32>
    %cst_73 = arith.constant dense<0.000000e+00> : vector<1xf32>
    %341 = vector.multi_reduction <add>, %340, %cst_73 [1, 2] : vector<1x4x128xf32> to vector<1xf32>
    %342 = vector.shape_cast %341 : vector<1xf32> to vector<1x1x1xf32>
    %343 = vector.extract %342[0, 0, 0] : f32 from vector<1x1x1xf32>
    %344 = arith.mulf %339, %339 : vector<4x128xf32>
    %345 = vector.shape_cast %344 : vector<4x128xf32> to vector<1x4x128xf32>
    %cst_74 = arith.constant dense<0.000000e+00> : vector<1xf32>
    %346 = vector.multi_reduction <add>, %345, %cst_74 [1, 2] : vector<1x4x128xf32> to vector<1xf32>
    %347 = vector.shape_cast %346 : vector<1xf32> to vector<1x1x1xf32>
    %348 = vector.extract %347[0, 0, 0] : f32 from vector<1x1x1xf32>
    %cst_75 = arith.constant 0.001953125 : f32
    %349 = arith.mulf %343, %cst_75 : f32
    %cst_76 = arith.constant 0.001953125 : f32
    %350 = arith.mulf %348, %cst_76 : f32
    %351 = arith.mulf %349, %349 : f32
    %352 = arith.subf %350, %351 : f32
    %cst_77 = arith.constant 0.000000e+00 : f32
    %353 = arith.maximumf %352, %cst_77 : f32
    %354 = arith.mulf %309, %309 : f32
    %355 = arith.mulf %354, %353 : f32
    %cst_78 = arith.constant 9.99999974E-6 : f32
    %356 = arith.addf %355, %cst_78 : f32
    %357 = math.rsqrt %356 : f32
    %358 = arith.mulf %309, %310 : f32
    %359 = arith.mulf %358, %357 : f32
    %360 = arith.mulf %359, %349 : f32
    %361 = arith.subf %311, %360 : f32
    %362 = vector.broadcast %359 : f32 to vector<4x128xf32>
    %363 = arith.mulf %339, %362 : vector<4x128xf32>
    %364 = arith.addf %305, %363 : vector<4x128xf32>
    %365 = vector.broadcast %361 : f32 to vector<4x128xf32>
    %366 = arith.addf %364, %365 : vector<4x128xf32>
    %c42 = arith.constant 42 : index
    %367 = memref.load %arg1[%c42] : memref<63xf32, #tpu.memory_space<smem>>
    %c43 = arith.constant 43 : index
    %368 = memref.load %arg1[%c43] : memref<63xf32, #tpu.memory_space<smem>>
    %c44 = arith.constant 44 : index
    %369 = memref.load %arg1[%c44] : memref<63xf32, #tpu.memory_space<smem>>
    %c45 = arith.constant 45 : index
    %370 = memref.load %arg1[%c45] : memref<63xf32, #tpu.memory_space<smem>>
    %c47 = arith.constant 47 : index
    %371 = memref.load %arg1[%c47] : memref<63xf32, #tpu.memory_space<smem>>
    %c48 = arith.constant 48 : index
    %372 = memref.load %arg1[%c48] : memref<63xf32, #tpu.memory_space<smem>>
    %373 = vector.shape_cast %366 : vector<4x128xf32> to vector<1x4x128xf32>
    %cst_79 = arith.constant dense<0.000000e+00> : vector<1xf32>
    %374 = vector.multi_reduction <add>, %373, %cst_79 [1, 2] : vector<1x4x128xf32> to vector<1xf32>
    %375 = vector.shape_cast %374 : vector<1xf32> to vector<1x1x1xf32>
    %376 = vector.extract %375[0, 0, 0] : f32 from vector<1x1x1xf32>
    %377 = arith.mulf %366, %366 : vector<4x128xf32>
    %378 = vector.shape_cast %377 : vector<4x128xf32> to vector<1x4x128xf32>
    %cst_80 = arith.constant dense<0.000000e+00> : vector<1xf32>
    %379 = vector.multi_reduction <add>, %378, %cst_80 [1, 2] : vector<1x4x128xf32> to vector<1xf32>
    %380 = vector.shape_cast %379 : vector<1xf32> to vector<1x1x1xf32>
    %381 = vector.extract %380[0, 0, 0] : f32 from vector<1x1x1xf32>
    %cst_81 = arith.constant 0.001953125 : f32
    %382 = arith.mulf %376, %cst_81 : f32
    %cst_82 = arith.constant 0.001953125 : f32
    %383 = arith.mulf %381, %cst_82 : f32
    %384 = arith.mulf %382, %382 : f32
    %385 = arith.subf %383, %384 : f32
    %cst_83 = arith.constant 0.000000e+00 : f32
    %386 = arith.maximumf %385, %cst_83 : f32
    %387 = arith.mulf %367, %367 : f32
    %388 = arith.mulf %387, %386 : f32
    %cst_84 = arith.constant 9.99999974E-6 : f32
    %389 = arith.addf %388, %cst_84 : f32
    %390 = math.rsqrt %389 : f32
    %391 = arith.mulf %367, %368 : f32
    %392 = arith.mulf %391, %390 : f32
    %393 = arith.mulf %392, %382 : f32
    %394 = arith.subf %369, %393 : f32
    %395 = vector.broadcast %392 : f32 to vector<4x128xf32>
    %396 = arith.mulf %366, %395 : vector<4x128xf32>
    %397 = vector.broadcast %394 : f32 to vector<4x128xf32>
    %398 = arith.addf %396, %397 : vector<4x128xf32>
    %cst_85 = arith.constant 0.000000e+00 : f32
    %399 = vector.broadcast %cst_85 : f32 to vector<4x128xf32>
    %400 = arith.maximumf %398, %399 : vector<4x128xf32>
    %401 = vector.shape_cast %400 : vector<4x128xf32> to vector<1x4x128xf32>
    %cst_86 = arith.constant dense<0.000000e+00> : vector<1xf32>
    %402 = vector.multi_reduction <add>, %401, %cst_86 [1, 2] : vector<1x4x128xf32> to vector<1xf32>
    %403 = vector.shape_cast %402 : vector<1xf32> to vector<1x1x1xf32>
    %404 = vector.extract %403[0, 0, 0] : f32 from vector<1x1x1xf32>
    %405 = arith.mulf %400, %400 : vector<4x128xf32>
    %406 = vector.shape_cast %405 : vector<4x128xf32> to vector<1x4x128xf32>
    %cst_87 = arith.constant dense<0.000000e+00> : vector<1xf32>
    %407 = vector.multi_reduction <add>, %406, %cst_87 [1, 2] : vector<1x4x128xf32> to vector<1xf32>
    %408 = vector.shape_cast %407 : vector<1xf32> to vector<1x1x1xf32>
    %409 = vector.extract %408[0, 0, 0] : f32 from vector<1x1x1xf32>
    %cst_88 = arith.constant 0.001953125 : f32
    %410 = arith.mulf %404, %cst_88 : f32
    %cst_89 = arith.constant 0.001953125 : f32
    %411 = arith.mulf %409, %cst_89 : f32
    %412 = arith.mulf %410, %410 : f32
    %413 = arith.subf %411, %412 : f32
    %cst_90 = arith.constant 0.000000e+00 : f32
    %414 = arith.maximumf %413, %cst_90 : f32
    %415 = arith.mulf %370, %370 : f32
    %416 = arith.mulf %415, %414 : f32
    %cst_91 = arith.constant 9.99999974E-6 : f32
    %417 = arith.addf %416, %cst_91 : f32
    %418 = math.rsqrt %417 : f32
    %419 = arith.mulf %370, %371 : f32
    %420 = arith.mulf %419, %418 : f32
    %421 = arith.mulf %420, %410 : f32
    %422 = arith.subf %372, %421 : f32
    %423 = vector.broadcast %420 : f32 to vector<4x128xf32>
    %424 = arith.mulf %400, %423 : vector<4x128xf32>
    %425 = arith.addf %366, %424 : vector<4x128xf32>
    %426 = vector.broadcast %422 : f32 to vector<4x128xf32>
    %427 = arith.addf %425, %426 : vector<4x128xf32>
    %c49 = arith.constant 49 : index
    %428 = memref.load %arg1[%c49] : memref<63xf32, #tpu.memory_space<smem>>
    %c50 = arith.constant 50 : index
    %429 = memref.load %arg1[%c50] : memref<63xf32, #tpu.memory_space<smem>>
    %c51 = arith.constant 51 : index
    %430 = memref.load %arg1[%c51] : memref<63xf32, #tpu.memory_space<smem>>
    %c52 = arith.constant 52 : index
    %431 = memref.load %arg1[%c52] : memref<63xf32, #tpu.memory_space<smem>>
    %c54 = arith.constant 54 : index
    %432 = memref.load %arg1[%c54] : memref<63xf32, #tpu.memory_space<smem>>
    %c55 = arith.constant 55 : index
    %433 = memref.load %arg1[%c55] : memref<63xf32, #tpu.memory_space<smem>>
    %434 = vector.shape_cast %427 : vector<4x128xf32> to vector<1x4x128xf32>
    %cst_92 = arith.constant dense<0.000000e+00> : vector<1xf32>
    %435 = vector.multi_reduction <add>, %434, %cst_92 [1, 2] : vector<1x4x128xf32> to vector<1xf32>
    %436 = vector.shape_cast %435 : vector<1xf32> to vector<1x1x1xf32>
    %437 = vector.extract %436[0, 0, 0] : f32 from vector<1x1x1xf32>
    %438 = arith.mulf %427, %427 : vector<4x128xf32>
    %439 = vector.shape_cast %438 : vector<4x128xf32> to vector<1x4x128xf32>
    %cst_93 = arith.constant dense<0.000000e+00> : vector<1xf32>
    %440 = vector.multi_reduction <add>, %439, %cst_93 [1, 2] : vector<1x4x128xf32> to vector<1xf32>
    %441 = vector.shape_cast %440 : vector<1xf32> to vector<1x1x1xf32>
    %442 = vector.extract %441[0, 0, 0] : f32 from vector<1x1x1xf32>
    %cst_94 = arith.constant 0.001953125 : f32
    %443 = arith.mulf %437, %cst_94 : f32
    %cst_95 = arith.constant 0.001953125 : f32
    %444 = arith.mulf %442, %cst_95 : f32
    %445 = arith.mulf %443, %443 : f32
    %446 = arith.subf %444, %445 : f32
    %cst_96 = arith.constant 0.000000e+00 : f32
    %447 = arith.maximumf %446, %cst_96 : f32
    %448 = arith.mulf %428, %428 : f32
    %449 = arith.mulf %448, %447 : f32
    %cst_97 = arith.constant 9.99999974E-6 : f32
    %450 = arith.addf %449, %cst_97 : f32
    %451 = math.rsqrt %450 : f32
    %452 = arith.mulf %428, %429 : f32
    %453 = arith.mulf %452, %451 : f32
    %454 = arith.mulf %453, %443 : f32
    %455 = arith.subf %430, %454 : f32
    %456 = vector.broadcast %453 : f32 to vector<4x128xf32>
    %457 = arith.mulf %427, %456 : vector<4x128xf32>
    %458 = vector.broadcast %455 : f32 to vector<4x128xf32>
    %459 = arith.addf %457, %458 : vector<4x128xf32>
    %cst_98 = arith.constant 0.000000e+00 : f32
    %460 = vector.broadcast %cst_98 : f32 to vector<4x128xf32>
    %461 = arith.maximumf %459, %460 : vector<4x128xf32>
    %462 = vector.shape_cast %461 : vector<4x128xf32> to vector<1x4x128xf32>
    %cst_99 = arith.constant dense<0.000000e+00> : vector<1xf32>
    %463 = vector.multi_reduction <add>, %462, %cst_99 [1, 2] : vector<1x4x128xf32> to vector<1xf32>
    %464 = vector.shape_cast %463 : vector<1xf32> to vector<1x1x1xf32>
    %465 = vector.extract %464[0, 0, 0] : f32 from vector<1x1x1xf32>
    %466 = arith.mulf %461, %461 : vector<4x128xf32>
    %467 = vector.shape_cast %466 : vector<4x128xf32> to vector<1x4x128xf32>
    %cst_100 = arith.constant dense<0.000000e+00> : vector<1xf32>
    %468 = vector.multi_reduction <add>, %467, %cst_100 [1, 2] : vector<1x4x128xf32> to vector<1xf32>
    %469 = vector.shape_cast %468 : vector<1xf32> to vector<1x1x1xf32>
    %470 = vector.extract %469[0, 0, 0] : f32 from vector<1x1x1xf32>
    %cst_101 = arith.constant 0.001953125 : f32
    %471 = arith.mulf %465, %cst_101 : f32
    %cst_102 = arith.constant 0.001953125 : f32
    %472 = arith.mulf %470, %cst_102 : f32
    %473 = arith.mulf %471, %471 : f32
    %474 = arith.subf %472, %473 : f32
    %cst_103 = arith.constant 0.000000e+00 : f32
    %475 = arith.maximumf %474, %cst_103 : f32
    %476 = arith.mulf %431, %431 : f32
    %477 = arith.mulf %476, %475 : f32
    %cst_104 = arith.constant 9.99999974E-6 : f32
    %478 = arith.addf %477, %cst_104 : f32
    %479 = math.rsqrt %478 : f32
    %480 = arith.mulf %431, %432 : f32
    %481 = arith.mulf %480, %479 : f32
    %482 = arith.mulf %481, %471 : f32
    %483 = arith.subf %433, %482 : f32
    %484 = vector.broadcast %481 : f32 to vector<4x128xf32>
    %485 = arith.mulf %461, %484 : vector<4x128xf32>
    %486 = arith.addf %427, %485 : vector<4x128xf32>
    %487 = vector.broadcast %483 : f32 to vector<4x128xf32>
    %488 = arith.addf %486, %487 : vector<4x128xf32>
    %c56 = arith.constant 56 : index
    %489 = memref.load %arg1[%c56] : memref<63xf32, #tpu.memory_space<smem>>
    %c57 = arith.constant 57 : index
    %490 = memref.load %arg1[%c57] : memref<63xf32, #tpu.memory_space<smem>>
    %c58 = arith.constant 58 : index
    %491 = memref.load %arg1[%c58] : memref<63xf32, #tpu.memory_space<smem>>
    %c59 = arith.constant 59 : index
    %492 = memref.load %arg1[%c59] : memref<63xf32, #tpu.memory_space<smem>>
    %c61 = arith.constant 61 : index
    %493 = memref.load %arg1[%c61] : memref<63xf32, #tpu.memory_space<smem>>
    %c62 = arith.constant 62 : index
    %494 = memref.load %arg1[%c62] : memref<63xf32, #tpu.memory_space<smem>>
    %495 = vector.shape_cast %488 : vector<4x128xf32> to vector<1x4x128xf32>
    %cst_105 = arith.constant dense<0.000000e+00> : vector<1xf32>
    %496 = vector.multi_reduction <add>, %495, %cst_105 [1, 2] : vector<1x4x128xf32> to vector<1xf32>
    %497 = vector.shape_cast %496 : vector<1xf32> to vector<1x1x1xf32>
    %498 = vector.extract %497[0, 0, 0] : f32 from vector<1x1x1xf32>
    %499 = arith.mulf %488, %488 : vector<4x128xf32>
    %500 = vector.shape_cast %499 : vector<4x128xf32> to vector<1x4x128xf32>
    %cst_106 = arith.constant dense<0.000000e+00> : vector<1xf32>
    %501 = vector.multi_reduction <add>, %500, %cst_106 [1, 2] : vector<1x4x128xf32> to vector<1xf32>
    %502 = vector.shape_cast %501 : vector<1xf32> to vector<1x1x1xf32>
    %503 = vector.extract %502[0, 0, 0] : f32 from vector<1x1x1xf32>
    %cst_107 = arith.constant 0.001953125 : f32
    %504 = arith.mulf %498, %cst_107 : f32
    %cst_108 = arith.constant 0.001953125 : f32
    %505 = arith.mulf %503, %cst_108 : f32
    %506 = arith.mulf %504, %504 : f32
    %507 = arith.subf %505, %506 : f32
    %cst_109 = arith.constant 0.000000e+00 : f32
    %508 = arith.maximumf %507, %cst_109 : f32
    %509 = arith.mulf %489, %489 : f32
    %510 = arith.mulf %509, %508 : f32
    %cst_110 = arith.constant 9.99999974E-6 : f32
    %511 = arith.addf %510, %cst_110 : f32
    %512 = math.rsqrt %511 : f32
    %513 = arith.mulf %489, %490 : f32
    %514 = arith.mulf %513, %512 : f32
    %515 = arith.mulf %514, %504 : f32
    %516 = arith.subf %491, %515 : f32
    %517 = vector.broadcast %514 : f32 to vector<4x128xf32>
    %518 = arith.mulf %488, %517 : vector<4x128xf32>
    %519 = vector.broadcast %516 : f32 to vector<4x128xf32>
    %520 = arith.addf %518, %519 : vector<4x128xf32>
    %cst_111 = arith.constant 0.000000e+00 : f32
    %521 = vector.broadcast %cst_111 : f32 to vector<4x128xf32>
    %522 = arith.maximumf %520, %521 : vector<4x128xf32>
    %523 = vector.shape_cast %522 : vector<4x128xf32> to vector<1x4x128xf32>
    %cst_112 = arith.constant dense<0.000000e+00> : vector<1xf32>
    %524 = vector.multi_reduction <add>, %523, %cst_112 [1, 2] : vector<1x4x128xf32> to vector<1xf32>
    %525 = vector.shape_cast %524 : vector<1xf32> to vector<1x1x1xf32>
    %526 = vector.extract %525[0, 0, 0] : f32 from vector<1x1x1xf32>
    %527 = arith.mulf %522, %522 : vector<4x128xf32>
    %528 = vector.shape_cast %527 : vector<4x128xf32> to vector<1x4x128xf32>
    %cst_113 = arith.constant dense<0.000000e+00> : vector<1xf32>
    %529 = vector.multi_reduction <add>, %528, %cst_113 [1, 2] : vector<1x4x128xf32> to vector<1xf32>
    %530 = vector.shape_cast %529 : vector<1xf32> to vector<1x1x1xf32>
    %531 = vector.extract %530[0, 0, 0] : f32 from vector<1x1x1xf32>
    %cst_114 = arith.constant 0.001953125 : f32
    %532 = arith.mulf %526, %cst_114 : f32
    %cst_115 = arith.constant 0.001953125 : f32
    %533 = arith.mulf %531, %cst_115 : f32
    %534 = arith.mulf %532, %532 : f32
    %535 = arith.subf %533, %534 : f32
    %cst_116 = arith.constant 0.000000e+00 : f32
    %536 = arith.maximumf %535, %cst_116 : f32
    %537 = arith.mulf %492, %492 : f32
    %538 = arith.mulf %537, %536 : f32
    %cst_117 = arith.constant 9.99999974E-6 : f32
    %539 = arith.addf %538, %cst_117 : f32
    %540 = math.rsqrt %539 : f32
    %541 = arith.mulf %492, %493 : f32
    %542 = arith.mulf %541, %540 : f32
    %543 = arith.mulf %542, %532 : f32
    %544 = arith.subf %494, %543 : f32
    %545 = vector.broadcast %542 : f32 to vector<4x128xf32>
    %546 = arith.mulf %522, %545 : vector<4x128xf32>
    %547 = arith.addf %488, %546 : vector<4x128xf32>
    %548 = vector.broadcast %544 : f32 to vector<4x128xf32>
    %549 = arith.addf %547, %548 : vector<4x128xf32>
    %550 = arith.negf %549 : vector<4x128xf32>
    %551 = math.exp %550 : vector<4x128xf32>
    %cst_118 = arith.constant 1.000000e+00 : f32
    %552 = vector.broadcast %cst_118 : f32 to vector<4x128xf32>
    %553 = arith.addf %552, %551 : vector<4x128xf32>
    %554 = arith.divf %552, %553 : vector<4x128xf32>
    %c0_119 = arith.constant 0 : index
    %c0_120 = arith.constant 0 : index
    %555 = vector.load %arg3[%c0_119, %c0_120] : memref<4x128xf32, #tpu.memory_space<vmem>>, vector<4x128xf32>
    tpu.vector_store %arg3[%c0_119, %c0_120], %554 {strides = array<i32>} : memref<4x128xf32, #tpu.memory_space<vmem>>, vector<4x128xf32>,
    return
  }
  func.func @transform_0(%arg0: i32) -> i32 {
    %c0_i32 = arith.constant 0 : i32
    %c0_i32_0 = arith.constant 0 : i32
    return %c0_i32 : i32
  }
  func.func @transform_1(%arg0: i32) -> (i32, i32) {
    %c0_i32 = arith.constant 0 : i32
    %c0_i32_0 = arith.constant 0 : i32
    %c0_i32_1 = arith.constant 0 : i32
    return %c0_i32, %c0_i32_0 : i32, i32
  }
  func.func @transform_2(%arg0: i32) -> (i32, i32) {
    %c0_i32 = arith.constant 0 : i32
    %c0_i32_0 = arith.constant 0 : i32
    %c0_i32_1 = arith.constant 0 : i32
    return %c0_i32, %c0_i32_0 : i32, i32
  }
}

</mosaic_0001>

<llo_original>
// kernel: tpu_custom_call.1
$region0: #{tpu_custom_call.1}
  #allocation0 [shape = 'u32[]', space=smem, size = 0x4, offset = 0x4, fixed_abs, tag = 'smem constant byte address 0x4 - core index']
  #allocation1 [shape = 'u32[144,128]{1,0:T(1,128)}', space=vmem, size = 0x12000, scoped, tag = 'internal scratch']
  %s0 = inlined_call_operand.hbm [shape: f32[63], index: 0, kind: input, shape index: {}]
  %s1 = inlined_call_operand.hbm [shape: f32[4,128], index: 1, kind: input, shape index: {}]
  %s2 = inlined_call_operand.hbm [shape: f32[4,128], index: 2, kind: output, shape index: {}]
  %s3 = sld [smem:[#allocation0]]
  $region26: #{tpu_custom_call.1} parent=0
    _
  %s5 = ssub.s32 1, %s3
  %s6 = scalar_select 0, %s5, %s3
  $region1: #{tpu_custom_call.1} parent=0
    #allocation2 [shape = 'u8[512]{0}', space=smem, size = 0x200, scoped, tag = 'input window, operand 0, single buffered']
    #allocation3 [shape = 's32[1]{0}', space=sflag, size = 0x4, scoped, tag = 'scoped memory for tpu_custom_call.1']
    #allocation4 [shape = 's32[1]{0}', space=sflag, size = 0x4, scoped, tag = 'scoped memory for tpu_custom_call.1']
    #allocation5 [shape = 's32[1]{0}', space=sflag, size = 0x4, scoped, tag = 'scoped memory for tpu_custom_call.1']
    #allocation6 [shape = 'u8[2048]{0}', space=vmem, size = 0x800, scoped, tag = 'input window, operand 1, single buffered']
    #allocation7 [shape = 'u8[2048]{0}', space=vmem, size = 0x800, scoped, tag = 'output window, operand 0, single buffered']
    %7 = vsyncpa [#allocation5], 0
    %8 = vsyncpa [#allocation3], 0
    %9 = vsyncpa [#allocation4], 0
    // Predicated region
    $region2: #{tpu_custom_call.1} parent=1 // pred_check
      _
    $region3: #{tpu_custom_call.1} parent=1 // pred_check_branch
      %11 = sbr.rel (0) target = $region5
    $region4: #{tpu_custom_call.1} parent=1 // pred_region
      %s13 = ssub.s32 16, 16
      %14 = vsyncadd [#allocation5], %s13
      %17 = dma.hbm_to_smem %s0, 16, [#allocation2], [#allocation5]
    $region5: #{tpu_custom_call.1} parent=1 // pred_fallthru
      _
    // Predicated region
    $region6: #{tpu_custom_call.1} parent=1 // pred_check
      _
    $region7: #{tpu_custom_call.1} parent=1 // pred_check_branch
      %19 = sbr.rel (0) target = $region9
    $region8: #{tpu_custom_call.1} parent=1 // pred_region
      %s21 = ssub.s32 64, 64
      %22 = vsyncadd [#allocation3], %s21
      %s24 = sshll.u32 [#allocation6], 4
      %s25 = int_to_ptr.vmem [resolvable:$true] %s24
      %27 = dma.hbm_to_vmem [thread:$0]  %s1, 64, %s25, [#allocation3]
    $region9: #{tpu_custom_call.1} parent=1 // pred_fallthru
      _
    // Predicated region
    $region10: #{tpu_custom_call.1} parent=1 // pred_check
      _
    $region11: #{tpu_custom_call.1} parent=1 // pred_check_branch
      %29 = sbr.rel (0) target = $region13
    $region12: #{tpu_custom_call.1} parent=1 // pred_region
      %30 = dma.done [#allocation5], 16
    $region13: #{tpu_custom_call.1} parent=1 // pred_fallthru
      _
    // Predicated region
    $region14: #{tpu_custom_call.1} parent=1 // pred_check
      _
    $region15: #{tpu_custom_call.1} parent=1 // pred_check_branch
      %32 = sbr.rel (0) target = $region17
    $region16: #{tpu_custom_call.1} parent=1 // pred_region
      %33 = dma.done [#allocation3], 64
    $region17: #{tpu_custom_call.1} parent=1 // pred_fallthru
      _
    %34 = sfence
    %v35 = vld [vmem:[#allocation6] sm:$0xf]
    %s36 = sld [smem:[#allocation2]]
    %s37 = sld [smem:[#allocation2 + $0x1]]
    %s38 = sld [smem:[#allocation2 + $0x2]]
    %s39 = sld [smem:[#allocation2 + $0x3]]
    %s40 = sld [smem:[#allocation2 + $0x5]]
    %s41 = sld [smem:[#allocation2 + $0x6]]
    %vm42 = vcmask 1043456
    %v43 = vsel %vm42, %v35, 0.0
    %44 = vadd.xlane.f32.xlu0 %v43
    %v45 = vpop.xlane.xlu0 %44
    %v46 = vrot.slane %v45, 4
    %v47 = vadd.f32 %v45, %v46
    %v48 = vrot.slane %v47, 2
    %v49 = vadd.f32 %v47, %v48
    %v50 = vrot.slane %v49, 1
    %v51 = vadd.f32 %v49, %v50
    %s52 = vtos %v51
    %v53 = vmul.f32 %v35, %v35
    %v54 = vsel %vm42, %v53, 0.0
    %55 = vadd.xlane.f32.xlu0 %v54
    %v56 = vpop.xlane.xlu0 %55
    %v57 = vrot.slane %v56, 4
    %v58 = vadd.f32 %v56, %v57
    %v59 = vrot.slane %v58, 2
    %v60 = vadd.f32 %v58, %v59
    %v61 = vrot.slane %v60, 1
    %v62 = vadd.f32 %v60, %v61
    %s63 = vtos %v62
    %s64 = smul.f32 %s52, 0.001953125
    %s65 = smul.f32 %s63, 0.001953125
    %s66 = smul.f32 %s64, %s64
    %s67 = ssub.f32 %s65, %s66
    %s68 = smax.f32 %s67, 0.0
    %s69 = smul.f32 %s36, %s36
    %s70 = smul.f32 %s69, %s68
    %s71 = sadd.f32 %s70, 1e-05
    %v72 = vstv %s71
    %v73 = vrsqrt.pop %v72
    %s74 = vtos %v73
    %s75 = smul.f32 %s36, %s37
    %s76 = smul.f32 %s75, %s74
    %s77 = smul.f32 %s76, %s64
    %s78 = ssub.f32 %s38, %s77
    %v79 = vstv %s76
    %v80 = vmul.f32 %v35, %v79
    %v81 = vstv %s78
    %v82 = vadd.f32 %v80, %v81
    %v83 = vmax.f32 %v82, 0.0
    %v84 = vsel %vm42, %v83, 0.0
    %85 = vadd.xlane.f32.xlu0 %v84
    %v86 = vpop.xlane.xlu0 %85
    %v87 = vrot.slane %v86, 4
    %v88 = vadd.f32 %v86, %v87
    %v89 = vrot.slane %v88, 2
    %v90 = vadd.f32 %v88, %v89
    %v91 = vrot.slane %v90, 1
    %v92 = vadd.f32 %v90, %v91
    %s93 = vtos %v92
    %v94 = vmul.f32 %v83, %v83
    %v95 = vsel %vm42, %v94, 0.0
    %96 = vadd.xlane.f32.xlu0 %v95
    %v97 = vpop.xlane.xlu0 %96
    %v98 = vrot.slane %v97, 4
    %v99 = vadd.f32 %v97, %v98
    %v100 = vrot.slane %v99, 2
    %v101 = vadd.f32 %v99, %v100
    %v102 = vrot.slane %v101, 1
    %v103 = vadd.f32 %v101, %v102
    %s104 = vtos %v103
    %s105 = smul.f32 %s93, 0.001953125
    %s106 = smul.f32 %s104, 0.001953125
    %s107 = smul.f32 %s105, %s105
    %s108 = ssub.f32 %s106, %s107
    %s109 = smax.f32 %s108, 0.0
    %s110 = smul.f32 %s39, %s39
    %s111 = smul.f32 %s110, %s109
    %s112 = sadd.f32 %s111, 1e-05
    %v113 = vstv %s112
    %v114 = vrsqrt.pop %v113
    %s115 = vtos %v114
    %s116 = smul.f32 %s39, %s40
    %s117 = smul.f32 %s116, %s115
    %s118 = smul.f32 %s117, %s105
    %s119 = ssub.f32 %s41, %s118
    %v120 = vstv %s117
    %v121 = vmul.f32 %v83, %v120
    %v122 = vadd.f32 %v35, %v121
    %v123 = vstv %s119
    %v124 = vadd.f32 %v122, %v123
    %s125 = sld [smem:[#allocation2 + $0x7]]
    %s126 = sld [smem:[#allocation2 + $0x8]]
    %s127 = sld [smem:[#allocation2 + $0x9]]
    %s128 = sld [smem:[#allocation2 + $0xa]]
    %s129 = sld [smem:[#allocation2 + $0xc]]
    %s130 = sld [smem:[#allocation2 + $0xd]]
    %v131 = vsel %vm42, %v124, 0.0
    %132 = vadd.xlane.f32.xlu0 %v131
    %v133 = vpop.xlane.xlu0 %132
    %v134 = vrot.slane %v133, 4
    %v135 = vadd.f32 %v133, %v134
    %v136 = vrot.slane %v135, 2
    %v137 = vadd.f32 %v135, %v136
    %v138 = vrot.slane %v137, 1
    %v139 = vadd.f32 %v137, %v138
    %s140 = vtos %v139
    %v141 = vmul.f32 %v124, %v124
    %v142 = vsel %vm42, %v141, 0.0
    %143 = vadd.xlane.f32.xlu0 %v142
    %v144 = vpop.xlane.xlu0 %143
    %v145 = vrot.slane %v144, 4
    %v146 = vadd.f32 %v144, %v145
    %v147 = vrot.slane %v146, 2
    %v148 = vadd.f32 %v146, %v147
    %v149 = vrot.slane %v148, 1
    %v150 = vadd.f32 %v148, %v149
    %s151 = vtos %v150
    %s152 = smul.f32 %s140, 0.001953125
    %s153 = smul.f32 %s151, 0.001953125
    %s154 = smul.f32 %s152, %s152
    %s155 = ssub.f32 %s153, %s154
    %s156 = smax.f32 %s155, 0.0
    %s157 = smul.f32 %s125, %s125
    %s158 = smul.f32 %s157, %s156
    %s159 = sadd.f32 %s158, 1e-05
    %v160 = vstv %s159
    %v161 = vrsqrt.pop %v160
    %s162 = vtos %v161
    %s163 = smul.f32 %s125, %s126
    %s164 = smul.f32 %s163, %s162
    %s165 = smul.f32 %s164, %s152
    %s166 = ssub.f32 %s127, %s165
    %v167 = vstv %s164
    %v168 = vmul.f32 %v124, %v167
    %v169 = vstv %s166
    %v170 = vadd.f32 %v168, %v169
    %v171 = vmax.f32 %v170, 0.0
    %v172 = vsel %vm42, %v171, 0.0
    %173 = vadd.xlane.f32.xlu0 %v172
    %v174 = vpop.xlane.xlu0 %173
    %v175 = vrot.slane %v174, 4
    %v176 = vadd.f32 %v174, %v175
    %v177 = vrot.slane %v176, 2
    %v178 = vadd.f32 %v176, %v177
    %v179 = vrot.slane %v178, 1
    %v180 = vadd.f32 %v178, %v179
    %s181 = vtos %v180
    %v182 = vmul.f32 %v171, %v171
    %v183 = vsel %vm42, %v182, 0.0
    %184 = vadd.xlane.f32.xlu0 %v183
    %v185 = vpop.xlane.xlu0 %184
    %v186 = vrot.slane %v185, 4
    %v187 = vadd.f32 %v185, %v186
    %v188 = vrot.slane %v187, 2
    %v189 = vadd.f32 %v187, %v188
    %v190 = vrot.slane %v189, 1
    %v191 = vadd.f32 %v189, %v190
    %s192 = vtos %v191
    %s193 = smul.f32 %s181, 0.001953125
    %s194 = smul.f32 %s192, 0.001953125
    %s195 = smul.f32 %s193, %s193
    %s196 = ssub.f32 %s194, %s195
    %s197 = smax.f32 %s196, 0.0
    %s198 = smul.f32 %s128, %s128
    %s199 = smul.f32 %s198, %s197
    %s200 = sadd.f32 %s199, 1e-05
    %v201 = vstv %s200
    %v202 = vrsqrt.pop %v201
    %s203 = vtos %v202
    %s204 = smul.f32 %s128, %s129
    %s205 = smul.f32 %s204, %s203
    %s206 = smul.f32 %s205, %s193
    %s207 = ssub.f32 %s130, %s206
    %v208 = vstv %s205
    %v209 = vmul.f32 %v171, %v208
    %v210 = vadd.f32 %v124, %v209
    %v211 = vstv %s207
    %v212 = vadd.f32 %v210, %v211
    %s213 = sld [smem:[#allocation2 + $0xe]]
    %s214 = sld [smem:[#allocation2 + $0xf]]
    %s215 = sld [smem:[#allocation2 + $0x10]]
    %s216 = sld [smem:[#allocation2 + $0x11]]
    %s217 = sld [smem:[#allocation2 + $0x13]]
    %s218 = sld [smem:[#allocation2 + $0x14]]
    %v219 = vsel %vm42, %v212, 0.0
    %220 = vadd.xlane.f32.xlu0 %v219
    %v221 = vpop.xlane.xlu0 %220
    %v222 = vrot.slane %v221, 4
    %v223 = vadd.f32 %v221, %v222
    %v224 = vrot.slane %v223, 2
    %v225 = vadd.f32 %v223, %v224
    %v226 = vrot.slane %v225, 1
    %v227 = vadd.f32 %v225, %v226
    %s228 = vtos %v227
    %v229 = vmul.f32 %v212, %v212
    %v230 = vsel %vm42, %v229, 0.0
    %231 = vadd.xlane.f32.xlu0 %v230
    %v232 = vpop.xlane.xlu0 %231
    %v233 = vrot.slane %v232, 4
    %v234 = vadd.f32 %v232, %v233
    %v235 = vrot.slane %v234, 2
    %v236 = vadd.f32 %v234, %v235
    %v237 = vrot.slane %v236, 1
    %v238 = vadd.f32 %v236, %v237
    %s239 = vtos %v238
    %s240 = smul.f32 %s228, 0.001953125
    %s241 = smul.f32 %s239, 0.001953125
    %s242 = smul.f32 %s240, %s240
    %s243 = ssub.f32 %s241, %s242
    %s244 = smax.f32 %s243, 0.0
    %s245 = smul.f32 %s213, %s213
    %s246 = smul.f32 %s245, %s244
    %s247 = sadd.f32 %s246, 1e-05
    %v248 = vstv %s247
    %v249 = vrsqrt.pop %v248
    %s250 = vtos %v249
    %s251 = smul.f32 %s213, %s214
    %s252 = smul.f32 %s251, %s250
    %s253 = smul.f32 %s252, %s240
    %s254 = ssub.f32 %s215, %s253
    %v255 = vstv %s252
    %v256 = vmul.f32 %v212, %v255
    %v257 = vstv %s254
    %v258 = vadd.f32 %v256, %v257
    %v259 = vmax.f32 %v258, 0.0
    %v260 = vsel %vm42, %v259, 0.0
    %261 = vadd.xlane.f32.xlu0 %v260
    %v262 = vpop.xlane.xlu0 %261
    %v263 = vrot.slane %v262, 4
    %v264 = vadd.f32 %v262, %v263
    %v265 = vrot.slane %v264, 2
    %v266 = vadd.f32 %v264, %v265
    %v267 = vrot.slane %v266, 1
    %v268 = vadd.f32 %v266, %v267
    %s269 = vtos %v268
    %v270 = vmul.f32 %v259, %v259
    %v271 = vsel %vm42, %v270, 0.0
    %272 = vadd.xlane.f32.xlu0 %v271
    %v273 = vpop.xlane.xlu0 %272
    %v274 = vrot.slane %v273, 4
    %v275 = vadd.f32 %v273, %v274
    %v276 = vrot.slane %v275, 2
    %v277 = vadd.f32 %v275, %v276
    %v278 = vrot.slane %v277, 1
    %v279 = vadd.f32 %v277, %v278
    %s280 = vtos %v279
    %s281 = smul.f32 %s269, 0.001953125
    %s282 = smul.f32 %s280, 0.001953125
    %s283 = smul.f32 %s281, %s281
    %s284 = ssub.f32 %s282, %s283
    %s285 = smax.f32 %s284, 0.0
    %s286 = smul.f32 %s216, %s216
    %s287 = smul.f32 %s286, %s285
    %s288 = sadd.f32 %s287, 1e-05
    %v289 = vstv %s288
    %v290 = vrsqrt.pop %v289
    %s291 = vtos %v290
    %s292 = smul.f32 %s216, %s217
    %s293 = smul.f32 %s292, %s291
    %s294 = smul.f32 %s293, %s281
    %s295 = ssub.f32 %s218, %s294
    %v296 = vstv %s293
    %v297 = vmul.f32 %v259, %v296
    %v298 = vadd.f32 %v212, %v297
    %v299 = vstv %s295
    %v300 = vadd.f32 %v298, %v299
    %s301 = sld [smem:[#allocation2 + $0x15]]
    %s302 = sld [smem:[#allocation2 + $0x16]]
    %s303 = sld [smem:[#allocation2 + $0x17]]
    %s304 = sld [smem:[#allocation2 + $0x18]]
    %s305 = sld [smem:[#allocation2 + $0x1a]]
    %s306 = sld [smem:[#allocation2 + $0x1b]]
    %v307 = vsel %vm42, %v300, 0.0
    %308 = vadd.xlane.f32.xlu0 %v307
    %v309 = vpop.xlane.xlu0 %308
    %v310 = vrot.slane %v309, 4
    %v311 = vadd.f32 %v309, %v310
    %v312 = vrot.slane %v311, 2
    %v313 = vadd.f32 %v311, %v312
    %v314 = vrot.slane %v313, 1
    %v315 = vadd.f32 %v313, %v314
    %s316 = vtos %v315
    %v317 = vmul.f32 %v300, %v300
    %v318 = vsel %vm42, %v317, 0.0
    %319 = vadd.xlane.f32.xlu0 %v318
    %v320 = vpop.xlane.xlu0 %319
    %v321 = vrot.slane %v320, 4
    %v322 = vadd.f32 %v320, %v321
    %v323 = vrot.slane %v322, 2
    %v324 = vadd.f32 %v322, %v323
    %v325 = vrot.slane %v324, 1
    %v326 = vadd.f32 %v324, %v325
    %s327 = vtos %v326
    %s328 = smul.f32 %s316, 0.001953125
    %s329 = smul.f32 %s327, 0.001953125
    %s330 = smul.f32 %s328, %s328
    %s331 = ssub.f32 %s329, %s330
    %s332 = smax.f32 %s331, 0.0
    %s333 = smul.f32 %s301, %s301
    %s334 = smul.f32 %s333, %s332
    %s335 = sadd.f32 %s334, 1e-05
    %v336 = vstv %s335
    %v337 = vrsqrt.pop %v336
    %s338 = vtos %v337
    %s339 = smul.f32 %s301, %s302
    %s340 = smul.f32 %s339, %s338
    %s341 = smul.f32 %s340, %s328
    %s342 = ssub.f32 %s303, %s341
    %v343 = vstv %s340
    %v344 = vmul.f32 %v300, %v343
    %v345 = vstv %s342
    %v346 = vadd.f32 %v344, %v345
    %v347 = vmax.f32 %v346, 0.0
    %v348 = vsel %vm42, %v347, 0.0
    %349 = vadd.xlane.f32.xlu0 %v348
    %v350 = vpop.xlane.xlu0 %349
    %v351 = vrot.slane %v350, 4
    %v352 = vadd.f32 %v350, %v351
    %v353 = vrot.slane %v352, 2
    %v354 = vadd.f32 %v352, %v353
    %v355 = vrot.slane %v354, 1
    %v356 = vadd.f32 %v354, %v355
    %s357 = vtos %v356
    %v358 = vmul.f32 %v347, %v347
    %v359 = vsel %vm42, %v358, 0.0
    %360 = vadd.xlane.f32.xlu0 %v359
    %v361 = vpop.xlane.xlu0 %360
    %v362 = vrot.slane %v361, 4
    %v363 = vadd.f32 %v361, %v362
    %v364 = vrot.slane %v363, 2
    %v365 = vadd.f32 %v363, %v364
    %v366 = vrot.slane %v365, 1
    %v367 = vadd.f32 %v365, %v366
    %s368 = vtos %v367
    %s369 = smul.f32 %s357, 0.001953125
    %s370 = smul.f32 %s368, 0.001953125
    %s371 = smul.f32 %s369, %s369
    %s372 = ssub.f32 %s370, %s371
    %s373 = smax.f32 %s372, 0.0
    %s374 = smul.f32 %s304, %s304
    %s375 = smul.f32 %s374, %s373
    %s376 = sadd.f32 %s375, 1e-05
    %v377 = vstv %s376
    %v378 = vrsqrt.pop %v377
    %s379 = vtos %v378
    %s380 = smul.f32 %s304, %s305
    %s381 = smul.f32 %s380, %s379
    %s382 = smul.f32 %s381, %s369
    %s383 = ssub.f32 %s306, %s382
    %v384 = vstv %s381
    %v385 = vmul.f32 %v347, %v384
    %v386 = vadd.f32 %v300, %v385
    %v387 = vstv %s383
    %v388 = vadd.f32 %v386, %v387
    %s389 = sld [smem:[#allocation2 + $0x1c]]
    %s390 = sld [smem:[#allocation2 + $0x1d]]
    %s391 = sld [smem:[#allocation2 + $0x1e]]
    %s392 = sld [smem:[#allocation2 + $0x1f]]
    %s393 = sld [smem:[#allocation2 + $0x21]]
    %s394 = sld [smem:[#allocation2 + $0x22]]
    %v395 = vsel %vm42, %v388, 0.0
    %396 = vadd.xlane.f32.xlu0 %v395
    %v397 = vpop.xlane.xlu0 %396
    %v398 = vrot.slane %v397, 4
    %v399 = vadd.f32 %v397, %v398
    %v400 = vrot.slane %v399, 2
    %v401 = vadd.f32 %v399, %v400
    %v402 = vrot.slane %v401, 1
    %v403 = vadd.f32 %v401, %v402
    %s404 = vtos %v403
    %v405 = vmul.f32 %v388, %v388
    %v406 = vsel %vm42, %v405, 0.0
    %407 = vadd.xlane.f32.xlu0 %v406
    %v408 = vpop.xlane.xlu0 %407
    %v409 = vrot.slane %v408, 4
    %v410 = vadd.f32 %v408, %v409
    %v411 = vrot.slane %v410, 2
    %v412 = vadd.f32 %v410, %v411
    %v413 = vrot.slane %v412, 1
    %v414 = vadd.f32 %v412, %v413
    %s415 = vtos %v414
    %s416 = smul.f32 %s404, 0.001953125
    %s417 = smul.f32 %s415, 0.001953125
    %s418 = smul.f32 %s416, %s416
    %s419 = ssub.f32 %s417, %s418
    %s420 = smax.f32 %s419, 0.0
    %s421 = smul.f32 %s389, %s389
    %s422 = smul.f32 %s421, %s420
    %s423 = sadd.f32 %s422, 1e-05
    %v424 = vstv %s423
    %v425 = vrsqrt.pop %v424
    %s426 = vtos %v425
    %s427 = smul.f32 %s389, %s390
    %s428 = smul.f32 %s427, %s426
    %s429 = smul.f32 %s428, %s416
    %s430 = ssub.f32 %s391, %s429
    %v431 = vstv %s428
    %v432 = vmul.f32 %v388, %v431
    %v433 = vstv %s430
    %v434 = vadd.f32 %v432, %v433
    %v435 = vmax.f32 %v434, 0.0
    %v436 = vsel %vm42, %v435, 0.0
    %437 = vadd.xlane.f32.xlu0 %v436
    %v438 = vpop.xlane.xlu0 %437
    %v439 = vrot.slane %v438, 4
    %v440 = vadd.f32 %v438, %v439
    %v441 = vrot.slane %v440, 2
    %v442 = vadd.f32 %v440, %v441
    %v443 = vrot.slane %v442, 1
    %v444 = vadd.f32 %v442, %v443
    %s445 = vtos %v444
    %v446 = vmul.f32 %v435, %v435
    %v447 = vsel %vm42, %v446, 0.0
    %448 = vadd.xlane.f32.xlu0 %v447
    %v449 = vpop.xlane.xlu0 %448
    %v450 = vrot.slane %v449, 4
    %v451 = vadd.f32 %v449, %v450
    %v452 = vrot.slane %v451, 2
    %v453 = vadd.f32 %v451, %v452
    %v454 = vrot.slane %v453, 1
    %v455 = vadd.f32 %v453, %v454
    %s456 = vtos %v455
    %s457 = smul.f32 %s445, 0.001953125
    %s458 = smul.f32 %s456, 0.001953125
    %s459 = smul.f32 %s457, %s457
    %s460 = ssub.f32 %s458, %s459
    %s461 = smax.f32 %s460, 0.0
    %s462 = smul.f32 %s392, %s392
    %s463 = smul.f32 %s462, %s461
    %s464 = sadd.f32 %s463, 1e-05
    %v465 = vstv %s464
    %v466 = vrsqrt.pop %v465
    %s467 = vtos %v466
    %s468 = smul.f32 %s392, %s393
    %s469 = smul.f32 %s468, %s467
    %s470 = smul.f32 %s469, %s457
    %s471 = ssub.f32 %s394, %s470
    %v472 = vstv %s469
    %v473 = vmul.f32 %v435, %v472
    %v474 = vadd.f32 %v388, %v473
    %v475 = vstv %s471
    %v476 = vadd.f32 %v474, %v475
    %s477 = sld [smem:[#allocation2 + $0x23]]
    %s478 = sld [smem:[#allocation2 + $0x24]]
    %s479 = sld [smem:[#allocation2 + $0x25]]
    %s480 = sld [smem:[#allocation2 + $0x26]]
    %s481 = sld [smem:[#allocation2 + $0x28]]
    %s482 = sld [smem:[#allocation2 + $0x29]]
    %v483 = vsel %vm42, %v476, 0.0
    %484 = vadd.xlane.f32.xlu0 %v483
    %v485 = vpop.xlane.xlu0 %484
    %v486 = vrot.slane %v485, 4
    %v487 = vadd.f32 %v485, %v486
    %v488 = vrot.slane %v487, 2
    %v489 = vadd.f32 %v487, %v488
    %v490 = vrot.slane %v489, 1
    %v491 = vadd.f32 %v489, %v490
    %s492 = vtos %v491
    %v493 = vmul.f32 %v476, %v476
    %v494 = vsel %vm42, %v493, 0.0
    %495 = vadd.xlane.f32.xlu0 %v494
    %v496 = vpop.xlane.xlu0 %495
    %v497 = vrot.slane %v496, 4
    %v498 = vadd.f32 %v496, %v497
    %v499 = vrot.slane %v498, 2
    %v500 = vadd.f32 %v498, %v499
    %v501 = vrot.slane %v500, 1
    %v502 = vadd.f32 %v500, %v501
    %s503 = vtos %v502
    %s504 = smul.f32 %s492, 0.001953125
    %s505 = smul.f32 %s503, 0.001953125
    %s506 = smul.f32 %s504, %s504
    %s507 = ssub.f32 %s505, %s506
    %s508 = smax.f32 %s507, 0.0
    %s509 = smul.f32 %s477, %s477
    %s510 = smul.f32 %s509, %s508
    %s511 = sadd.f32 %s510, 1e-05
    %v512 = vstv %s511
    %v513 = vrsqrt.pop %v512
    %s514 = vtos %v513
    %s515 = smul.f32 %s477, %s478
    %s516 = smul.f32 %s515, %s514
    %s517 = smul.f32 %s516, %s504
    %s518 = ssub.f32 %s479, %s517
    %v519 = vstv %s516
    %v520 = vmul.f32 %v476, %v519
    %v521 = vstv %s518
    %v522 = vadd.f32 %v520, %v521
    %v523 = vmax.f32 %v522, 0.0
    %v524 = vsel %vm42, %v523, 0.0
    %525 = vadd.xlane.f32.xlu0 %v524
    %v526 = vpop.xlane.xlu0 %525
    %v527 = vrot.slane %v526, 4
    %v528 = vadd.f32 %v526, %v527
    %v529 = vrot.slane %v528, 2
    %v530 = vadd.f32 %v528, %v529
    %v531 = vrot.slane %v530, 1
    %v532 = vadd.f32 %v530, %v531
    %s533 = vtos %v532
    %v534 = vmul.f32 %v523, %v523
    %v535 = vsel %vm42, %v534, 0.0
    %536 = vadd.xlane.f32.xlu0 %v535
    %v537 = vpop.xlane.xlu0 %536
    %v538 = vrot.slane %v537, 4
    %v539 = vadd.f32 %v537, %v538
    %v540 = vrot.slane %v539, 2
    %v541 = vadd.f32 %v539, %v540
    %v542 = vrot.slane %v541, 1
    %v543 = vadd.f32 %v541, %v542
    %s544 = vtos %v543
    %s545 = smul.f32 %s533, 0.001953125
    %s546 = smul.f32 %s544, 0.001953125
    %s547 = smul.f32 %s545, %s545
    %s548 = ssub.f32 %s546, %s547
    %s549 = smax.f32 %s548, 0.0
    %s550 = smul.f32 %s480, %s480
    %s551 = smul.f32 %s550, %s549
    %s552 = sadd.f32 %s551, 1e-05
    %v553 = vstv %s552
    %v554 = vrsqrt.pop %v553
    %s555 = vtos %v554
    %s556 = smul.f32 %s480, %s481
    %s557 = smul.f32 %s556, %s555
    %s558 = smul.f32 %s557, %s545
    %s559 = ssub.f32 %s482, %s558
    %v560 = vstv %s557
    %v561 = vmul.f32 %v523, %v560
    %v562 = vadd.f32 %v476, %v561
    %v563 = vstv %s559
    %v564 = vadd.f32 %v562, %v563
    %s565 = sld [smem:[#allocation2 + $0x2a]]
    %s566 = sld [smem:[#allocation2 + $0x2b]]
    %s567 = sld [smem:[#allocation2 + $0x2c]]
    %s568 = sld [smem:[#allocation2 + $0x2d]]
    %s569 = sld [smem:[#allocation2 + $0x2f]]
    %s570 = sld [smem:[#allocation2 + $0x30]]
    %v571 = vsel %vm42, %v564, 0.0
    %572 = vadd.xlane.f32.xlu0 %v571
    %v573 = vpop.xlane.xlu0 %572
    %v574 = vrot.slane %v573, 4
    %v575 = vadd.f32 %v573, %v574
    %v576 = vrot.slane %v575, 2
    %v577 = vadd.f32 %v575, %v576
    %v578 = vrot.slane %v577, 1
    %v579 = vadd.f32 %v577, %v578
    %s580 = vtos %v579
    %v581 = vmul.f32 %v564, %v564
    %v582 = vsel %vm42, %v581, 0.0
    %583 = vadd.xlane.f32.xlu0 %v582
    %v584 = vpop.xlane.xlu0 %583
    %v585 = vrot.slane %v584, 4
    %v586 = vadd.f32 %v584, %v585
    %v587 = vrot.slane %v586, 2
    %v588 = vadd.f32 %v586, %v587
    %v589 = vrot.slane %v588, 1
    %v590 = vadd.f32 %v588, %v589
    %s591 = vtos %v590
    %s592 = smul.f32 %s580, 0.001953125
    %s593 = smul.f32 %s591, 0.001953125
    %s594 = smul.f32 %s592, %s592
    %s595 = ssub.f32 %s593, %s594
    %s596 = smax.f32 %s595, 0.0
    %s597 = smul.f32 %s565, %s565
    %s598 = smul.f32 %s597, %s596
    %s599 = sadd.f32 %s598, 1e-05
    %v600 = vstv %s599
    %v601 = vrsqrt.pop %v600
    %s602 = vtos %v601
    %s603 = smul.f32 %s565, %s566
    %s604 = smul.f32 %s603, %s602
    %s605 = smul.f32 %s604, %s592
    %s606 = ssub.f32 %s567, %s605
    %v607 = vstv %s604
    %v608 = vmul.f32 %v564, %v607
    %v609 = vstv %s606
    %v610 = vadd.f32 %v608, %v609
    %v611 = vmax.f32 %v610, 0.0
    %v612 = vsel %vm42, %v611, 0.0
    %613 = vadd.xlane.f32.xlu0 %v612
    %v614 = vpop.xlane.xlu0 %613
    %v615 = vrot.slane %v614, 4
    %v616 = vadd.f32 %v614, %v615
    %v617 = vrot.slane %v616, 2
    %v618 = vadd.f32 %v616, %v617
    %v619 = vrot.slane %v618, 1
    %v620 = vadd.f32 %v618, %v619
    %s621 = vtos %v620
    %v622 = vmul.f32 %v611, %v611
    %v623 = vsel %vm42, %v622, 0.0
    %624 = vadd.xlane.f32.xlu0 %v623
    %v625 = vpop.xlane.xlu0 %624
    %v626 = vrot.slane %v625, 4
    %v627 = vadd.f32 %v625, %v626
    %v628 = vrot.slane %v627, 2
    %v629 = vadd.f32 %v627, %v628
    %v630 = vrot.slane %v629, 1
    %v631 = vadd.f32 %v629, %v630
    %s632 = vtos %v631
    %s633 = smul.f32 %s621, 0.001953125
    %s634 = smul.f32 %s632, 0.001953125
    %s635 = smul.f32 %s633, %s633
    %s636 = ssub.f32 %s634, %s635
    %s637 = smax.f32 %s636, 0.0
    %s638 = smul.f32 %s568, %s568
    %s639 = smul.f32 %s638, %s637
    %s640 = sadd.f32 %s639, 1e-05
    %v641 = vstv %s640
    %v642 = vrsqrt.pop %v641
    %s643 = vtos %v642
    %s644 = smul.f32 %s568, %s569
    %s645 = smul.f32 %s644, %s643
    %s646 = smul.f32 %s645, %s633
    %s647 = ssub.f32 %s570, %s646
    %v648 = vstv %s645
    %v649 = vmul.f32 %v611, %v648
    %v650 = vadd.f32 %v564, %v649
    %v651 = vstv %s647
    %v652 = vadd.f32 %v650, %v651
    %s653 = sld [smem:[#allocation2 + $0x31]]
    %s654 = sld [smem:[#allocation2 + $0x32]]
    %s655 = sld [smem:[#allocation2 + $0x33]]
    %s656 = sld [smem:[#allocation2 + $0x34]]
    %s657 = sld [smem:[#allocation2 + $0x36]]
    %s658 = sld [smem:[#allocation2 + $0x37]]
    %v659 = vsel %vm42, %v652, 0.0
    %660 = vadd.xlane.f32.xlu0 %v659
    %v661 = vpop.xlane.xlu0 %660
    %v662 = vrot.slane %v661, 4
    %v663 = vadd.f32 %v661, %v662
    %v664 = vrot.slane %v663, 2
    %v665 = vadd.f32 %v663, %v664
    %v666 = vrot.slane %v665, 1
    %v667 = vadd.f32 %v665, %v666
    %s668 = vtos %v667
    %v669 = vmul.f32 %v652, %v652
    %v670 = vsel %vm42, %v669, 0.0
    %671 = vadd.xlane.f32.xlu0 %v670
    %v672 = vpop.xlane.xlu0 %671
    %v673 = vrot.slane %v672, 4
    %v674 = vadd.f32 %v672, %v673
    %v675 = vrot.slane %v674, 2
    %v676 = vadd.f32 %v674, %v675
    %v677 = vrot.slane %v676, 1
    %v678 = vadd.f32 %v676, %v677
    %s679 = vtos %v678
    %s680 = smul.f32 %s668, 0.001953125
    %s681 = smul.f32 %s679, 0.001953125
    %s682 = smul.f32 %s680, %s680
    %s683 = ssub.f32 %s681, %s682
    %s684 = smax.f32 %s683, 0.0
    %s685 = smul.f32 %s653, %s653
    %s686 = smul.f32 %s685, %s684
    %s687 = sadd.f32 %s686, 1e-05
    %v688 = vstv %s687
    %v689 = vrsqrt.pop %v688
    %s690 = vtos %v689
    %s691 = smul.f32 %s653, %s654
    %s692 = smul.f32 %s691, %s690
    %s693 = smul.f32 %s692, %s680
    %s694 = ssub.f32 %s655, %s693
    %v695 = vstv %s692
    %v696 = vmul.f32 %v652, %v695
    %v697 = vstv %s694
    %v698 = vadd.f32 %v696, %v697
    %v699 = vmax.f32 %v698, 0.0
    %v700 = vsel %vm42, %v699, 0.0
    %701 = vadd.xlane.f32.xlu0 %v700
    %v702 = vpop.xlane.xlu0 %701
    %v703 = vrot.slane %v702, 4
    %v704 = vadd.f32 %v702, %v703
    %v705 = vrot.slane %v704, 2
    %v706 = vadd.f32 %v704, %v705
    %v707 = vrot.slane %v706, 1
    %v708 = vadd.f32 %v706, %v707
    %s709 = vtos %v708
    %v710 = vmul.f32 %v699, %v699
    %v711 = vsel %vm42, %v710, 0.0
    %712 = vadd.xlane.f32.xlu0 %v711
    %v713 = vpop.xlane.xlu0 %712
    %v714 = vrot.slane %v713, 4
    %v715 = vadd.f32 %v713, %v714
    %v716 = vrot.slane %v715, 2
    %v717 = vadd.f32 %v715, %v716
    %v718 = vrot.slane %v717, 1
    %v719 = vadd.f32 %v717, %v718
    %s720 = vtos %v719
    %s721 = smul.f32 %s709, 0.001953125
    %s722 = smul.f32 %s720, 0.001953125
    %s723 = smul.f32 %s721, %s721
    %s724 = ssub.f32 %s722, %s723
    %s725 = smax.f32 %s724, 0.0
    %s726 = smul.f32 %s656, %s656
    %s727 = smul.f32 %s726, %s725
    %s728 = sadd.f32 %s727, 1e-05
    %v729 = vstv %s728
    %v730 = vrsqrt.pop %v729
    %s731 = vtos %v730
    %s732 = smul.f32 %s656, %s657
    %s733 = smul.f32 %s732, %s731
    %s734 = smul.f32 %s733, %s721
    %s735 = ssub.f32 %s658, %s734
    %v736 = vstv %s733
    %v737 = vmul.f32 %v699, %v736
    %v738 = vadd.f32 %v652, %v737
    %v739 = vstv %s735
    %v740 = vadd.f32 %v738, %v739
    %s741 = sld [smem:[#allocation2 + $0x38]]
    %s742 = sld [smem:[#allocation2 + $0x39]]
    %s743 = sld [smem:[#allocation2 + $0x3a]]
    %s744 = sld [smem:[#allocation2 + $0x3b]]
    %s745 = sld [smem:[#allocation2 + $0x3d]]
    %s746 = sld [smem:[#allocation2 + $0x3e]]
    %v747 = vsel %vm42, %v740, 0.0
    %748 = vadd.xlane.f32.xlu0 %v747
    %v749 = vpop.xlane.xlu0 %748
    %v750 = vrot.slane %v749, 4
    %v751 = vadd.f32 %v749, %v750
    %v752 = vrot.slane %v751, 2
    %v753 = vadd.f32 %v751, %v752
    %v754 = vrot.slane %v753, 1
    %v755 = vadd.f32 %v753, %v754
    %s756 = vtos %v755
    %v757 = vmul.f32 %v740, %v740
    %v758 = vsel %vm42, %v757, 0.0
    %759 = vadd.xlane.f32.xlu0 %v758
    %v760 = vpop.xlane.xlu0 %759
    %v761 = vrot.slane %v760, 4
    %v762 = vadd.f32 %v760, %v761
    %v763 = vrot.slane %v762, 2
    %v764 = vadd.f32 %v762, %v763
    %v765 = vrot.slane %v764, 1
    %v766 = vadd.f32 %v764, %v765
    %s767 = vtos %v766
    %s768 = smul.f32 %s756, 0.001953125
    %s769 = smul.f32 %s767, 0.001953125
    %s770 = smul.f32 %s768, %s768
    %s771 = ssub.f32 %s769, %s770
    %s772 = smax.f32 %s771, 0.0
    %s773 = smul.f32 %s741, %s741
    %s774 = smul.f32 %s773, %s772
    %s775 = sadd.f32 %s774, 1e-05
    %v776 = vstv %s775
    %v777 = vrsqrt.pop %v776
    %s778 = vtos %v777
    %s779 = smul.f32 %s741, %s742
    %s780 = smul.f32 %s779, %s778
    %s781 = smul.f32 %s780, %s768
    %s782 = ssub.f32 %s743, %s781
    %v783 = vstv %s780
    %v784 = vmul.f32 %v740, %v783
    %v785 = vstv %s782
    %v786 = vadd.f32 %v784, %v785
    %v787 = vmax.f32 %v786, 0.0
    %v788 = vsel %vm42, %v787, 0.0
    %789 = vadd.xlane.f32.xlu0 %v788
    %v790 = vpop.xlane.xlu0 %789
    %v791 = vrot.slane %v790, 4
    %v792 = vadd.f32 %v790, %v791
    %v793 = vrot.slane %v792, 2
    %v794 = vadd.f32 %v792, %v793
    %v795 = vrot.slane %v794, 1
    %v796 = vadd.f32 %v794, %v795
    %s797 = vtos %v796
    %v798 = vmul.f32 %v787, %v787
    %v799 = vsel %vm42, %v798, 0.0
    %800 = vadd.xlane.f32.xlu0 %v799
    %v801 = vpop.xlane.xlu0 %800
    %v802 = vrot.slane %v801, 4
    %v803 = vadd.f32 %v801, %v802
    %v804 = vrot.slane %v803, 2
    %v805 = vadd.f32 %v803, %v804
    %v806 = vrot.slane %v805, 1
    %v807 = vadd.f32 %v805, %v806
    %s808 = vtos %v807
    %s809 = smul.f32 %s797, 0.001953125
    %s810 = smul.f32 %s808, 0.001953125
    %s811 = smul.f32 %s809, %s809
    %s812 = ssub.f32 %s810, %s811
    %s813 = smax.f32 %s812, 0.0
    %s814 = smul.f32 %s744, %s744
    %s815 = smul.f32 %s814, %s813
    %s816 = sadd.f32 %s815, 1e-05
    %v817 = vstv %s816
    %v818 = vrsqrt.pop %v817
    %s819 = vtos %v818
    %s820 = smul.f32 %s744, %s745
    %s821 = smul.f32 %s820, %s819
    %s822 = smul.f32 %s821, %s809
    %s823 = ssub.f32 %s746, %s822
    %v824 = vstv %s821
    %v825 = vmul.f32 %v787, %v824
    %v826 = vadd.f32 %v740, %v825
    %v827 = vstv %s823
    %v828 = vadd.f32 %v826, %v827
    %v829 = vxor.u32 %v828, 2147483648
    %v830 = vmul.f32 %v829, 1.442695
    %v831 = vpow.pop %v830
    %v832 = vadd.f32 %v831, 1.0
    %v833 = vrcp.pop %v832
    %v834 = vmul.f32 1.0, %v833
    %835 = vst [vmem:[#allocation7] sm:$0xf] %v834
    // Predicated region
    $region18: #{tpu_custom_call.1} parent=1 // pred_check
      _
    $region19: #{tpu_custom_call.1} parent=1 // pred_check_branch
      %837 = sbr.rel (0) target = $region21
    $region20: #{tpu_custom_call.1} parent=1 // pred_region
      %s839 = ssub.s32 64, 64
      %840 = vsyncadd [#allocation4], %s839
      %s842 = sshll.u32 [#allocation7], 4
      %s843 = int_to_ptr.vmem [resolvable:$true] %s842
      %845 = dma.vmem_to_hbm [thread:$0]  %s843, 64, %s2, [#allocation4]
    $region21: #{tpu_custom_call.1} parent=1 // pred_fallthru
      _
    // Predicated region
    $region22: #{tpu_custom_call.1} parent=1 // pred_check
      _
    $region23: #{tpu_custom_call.1} parent=1 // pred_check_branch
      %847 = sbr.rel (0) target = $region25
    $region24: #{tpu_custom_call.1} parent=1 // pred_region
      %848 = dma.done [#allocation4], 64
    $region25: #{tpu_custom_call.1} parent=1 // pred_fallthru
      _
    %849 = vsyncpa [#allocation3], 1
    %850 = vsyncpa [#allocation4], 1
    %851 = vsyncpa [#allocation5], 1

</llo_original>
